<compile_context>
chip_gen: v6e
topology: v6e:2x2x1
jax: 0.10.0
libtpu: 0.0.40
codegen_flags: <defaults>
</compile_context>

<pallas_src>
import jax
import jax.numpy as jnp
from jax.experimental import pallas as pl
from jax.experimental.pallas import tpu as pltpu

IMAGENET_MEAN = (0.485, 0.456, 0.406)
IMAGENET_STD = (0.229, 0.224, 0.225)


def _bilinear_matrix(out_size: int, in_size: int) -> jnp.ndarray:
    """(out_size, in_size) matrix M s.t. M @ x bilinearly resizes axis 0.

    Half-pixel centers (torchvision Resize bilinear, antialias OFF).
    # TODO(synk): recent torchvision defaults antialias=True for tensor inputs when
    # downscaling; that low-pass prefilter is not reproduced here.
    """
    dst = jnp.arange(out_size, dtype=jnp.float32)
    scale = in_size / out_size
    src = jnp.clip((dst + 0.5) * scale - 0.5, 0.0, in_size - 1)
    i0 = jnp.floor(src).astype(jnp.int32)
    i1 = jnp.minimum(i0 + 1, in_size - 1)
    frac = src - i0.astype(jnp.float32)
    cols = jnp.arange(in_size)
    lo = (cols[None, :] == i0[:, None]).astype(jnp.float32) * (1.0 - frac)[:, None]
    hi = (cols[None, :] == i1[:, None]).astype(jnp.float32) * frac[:, None]
    return lo + hi


def _round_up(x: int, m: int) -> int:
    return ((x + m - 1) // m) * m


def _choose_plane_batch(nc: int, crop: int, h_in: int, w_in: int,
                        vmem_budget: int) -> int:
    """Planes per grid step.

    Largest P whose padding-aware per-step VMEM footprint fits `vmem_budget`,
    keeping >= 2 grid steps (both v7x TensorCores get work) and preferring exact
    divisors of N*C so there is no ragged last block.
    """
    lane = lambda x: _round_up(x, 128)

    def vmem_bytes(p: int) -> int:
        in_blk = 2 * p * _round_up(h_in, 16) * lane(w_in) * 2     # bf16 input, 2 buffers
        out_blk = 2 * p * _round_up(crop, 8) * lane(crop) * 4     # f32 output, 2 buffers
        rxt = _round_up(w_in, 16) * lane(crop) * 2                # invariant Rx^T
        ryr = p * _round_up(crop, 16) * lane(h_in) * 2            # invariant replicated Ry
        sb = 2 * p * 2 * 8 * lane(crop) * 4                       # scale/bias rows, 2 buffers
        mid = p * _round_up(h_in, 8) * lane(crop) * (4 + 2)       # f32 + bf16 intermediate
        acc = p * _round_up(crop, 8) * lane(crop) * 4             # live f32 result
        return in_blk + out_blk + rxt + ryr + sb + mid + acc

    min_blocks = 2 if nc >= 2 else 1
    p_cap = min(nc, 512)
    feasible = [p for p in range(1, p_cap + 1)
                if (nc + p - 1) // p >= min_blocks and vmem_bytes(p) <= vmem_budget]
    if not feasible:
        return 1
    p_max = max(feasible)
    divisors = [p for p in feasible if nc % p == 0]
    if divisors and 2 * max(divisors) >= p_max:
        return max(divisors)          # exact division: no ragged last block
    return p_max


def _resize_normalize_kernel(x_ref, rxt_ref, ryr_ref, sb_ref, o_ref):
    # x_ref  : (P, H_in, W_in)   bf16  P image planes of this grid step
    # rxt_ref: (W_in, crop)      bf16  Rx^T                    (grid-invariant)
    # ryr_ref: (P, crop, H_in)   bf16  Ry replicated per plane (grid-invariant)
    # sb_ref : (P, 2, 1, crop)   f32   per-plane [scale; bias] rows
    # o_ref  : (P, crop, crop)   f32
    p, h_in, w_in = x_ref.shape
    crop = o_ref.shape[-1]

    # Resize along W: one wide 2-D matmul over all P*H_in rows (bf16 x bf16 -> f32).
    x2 = x_ref[...].reshape(p * h_in, w_in)
    t = jnp.dot(x2, rxt_ref[...], preferred_element_type=jnp.float32)   # (P*H_in, crop)
    t = t.reshape(p, h_in, crop).astype(jnp.bfloat16)

    # Resize along H: batched per-plane matmul Ry @ T_p (bf16 x bf16 -> f32).
    acc = jax.lax.dot_general(
        ryr_ref[...], t,
        dimension_numbers=(((2,), (1,)), ((0,), (0,))),
        preferred_element_type=jnp.float32)                             # (P, crop, crop)

    # Normalization fused as an f32 scale/bias epilogue (per-plane rows).
    sb = sb_ref[...]
    scale = sb[:, 0]                                                    # (P, 1, crop)
    bias = sb[:, 1]                                                     # (P, 1, crop)
    o_ref[...] = (acc * scale + bias).astype(o_ref.dtype)


def pipeline_forward(image: jnp.ndarray, crop_size: int, count: int = 1,
                     mean=IMAGENET_MEAN, std=IMAGENET_STD) -> jnp.ndarray:
    """Pipeline.forward for the deterministic Identity/Resize configuration.

    image: (N, C, H, W) float32 in [0, 1].
    Returns (count, N, C, crop_size, crop_size) float32 (== torch.stack(l)).
    """
    N, C, H_in, W_in = image.shape
    mean = jnp.asarray(mean, dtype=jnp.float32)
    std = jnp.asarray(std, dtype=jnp.float32)
    assert mean.shape == (C,) and std.shape == (C,), "normalize stats must match C"

    nc = N * C

    # Generation-aware VMEM budgets (v5e/v6e: 128 MiB, v7x: 64 MiB physical).
    try:
        info = pltpu.get_tpu_info()
        vmem_cap = int(getattr(info, "vmem_capacity_bytes", 64 << 20))
    except Exception:
        vmem_cap = 64 << 20                     # conservative (v7x-sized) fallback
    per_step_budget = min(vmem_cap // 4, 24 << 20)
    vmem_limit = int(min((vmem_cap * 3) // 4, 96 << 20))

    P = _choose_plane_batch(nc, crop_size, H_in, W_in, per_step_budget)
    num_blocks = (nc + P - 1) // P

    # ---- host-side precompute ------------------------------------------------
    ry = _bilinear_matrix(crop_size, H_in)                      # (crop, H_in) f32
    rx = _bilinear_matrix(crop_size, W_in)                      # (crop, W_in) f32
    rxt = rx.T.astype(jnp.bfloat16)                             # (W_in, crop)
    ryr = jnp.broadcast_to(ry[None], (P, crop_size, H_in)).astype(jnp.bfloat16)

    inv_std = 1.0 / std
    ch = jnp.arange(nc) % C
    sb = jnp.stack([inv_std[ch], (-mean * inv_std)[ch]], axis=1)          # (nc, 2)
    sb = jnp.tile(sb[:, :, None, None], (1, 1, 1, crop_size)).astype(jnp.float32)

    planes = image.astype(jnp.bfloat16).reshape(nc, H_in, W_in)  # bf16 MXU operand

    flops = 2 * nc * (H_in * W_in * crop_size + H_in * crop_size * crop_size)
    bytes_accessed = (planes.size * 2 + nc * crop_size * crop_size * 4
                      + rxt.size * 2 + ryr.size * 2 + sb.size * 4)
    cost = pl.CostEstimate(flops=flops, transcendentals=0,
                           bytes_accessed=bytes_accessed)

    def build(single_buffer_invariants: bool):
        inv_kw = ({"pipeline_mode": pl.Buffered(1)}
                  if single_buffer_invariants else {})
        return pl.pallas_call(
            _resize_normalize_kernel,
            out_shape=jax.ShapeDtypeStruct((nc, crop_size, crop_size), jnp.float32),
            grid=(num_blocks,),
            in_specs=[
                pl.BlockSpec((P, H_in, W_in), lambda i: (i, 0, 0)),
                pl.BlockSpec((W_in, crop_size), lambda i: (0, 0), **inv_kw),
                pl.BlockSpec((P, crop_size, H_in), lambda i: (0, 0, 0), **inv_kw),
                pl.BlockSpec((P, 2, 1, crop_size), lambda i: (i, 0, 0, 0)),
            ],
            out_specs=pl.BlockSpec((P, crop_size, crop_size), lambda i: (i, 0, 0)),
            compiler_params=pltpu.CompilerParams(
                dimension_semantics=("parallel",),
                vmem_limit_bytes=vmem_limit),
            cost_estimate=cost,
        )

    try:
        out = jax.block_until_ready(build(True)(planes, rxt, ryr, sb))
    except Exception:
        # TODO(synk): pl.Buffered(1) single-buffering of grid-invariant operands is
        # not supported by this jax version; fall back to default double-buffering.
        out = build(False)(planes, rxt, ryr, sb)

    out = out.reshape(N, C, crop_size, crop_size)       # free reshape, no transpose

    # Every `count` iteration is identical in this deterministic configuration:
    # return a broadcast instead of materializing `count` HBM copies.
    return jnp.broadcast_to(out[None], (count, N, C, crop_size, crop_size))


if __name__ == "__main__":
    key = jax.random.PRNGKey(0)
    N, C, H, W = 2, 3, 32, 32
    crop_size, count = 16, 2

    image = jax.random.uniform(key, (N, C, H, W), dtype=jnp.float32)  # [0,1] "image"

    out = jax.block_until_ready(pipeline_forward(image, crop_size, count))
    assert out.shape == (count, N, C, crop_size, crop_size), out.shape
    assert out.dtype == jnp.float32
    assert bool(jnp.all(jnp.isfinite(out)))

    # ---- references ----------------------------------------------------------
    ry = _bilinear_matrix(crop_size, H)
    rx = _bilinear_matrix(crop_size, W)
    mean = jnp.asarray(IMAGENET_MEAN, jnp.float32)
    std = jnp.asarray(IMAGENET_STD, jnp.float32)

    # (1) Exact structural check against a plain-JAX model of the same bf16
    #     arithmetic (bf16 MXU operands, f32 accumulation, f32 epilogue).
    nc = N * C
    xb = image.astype(jnp.bfloat16).reshape(nc, H, W)
    t = jnp.einsum("phw,wc->phc", xb, rx.T.astype(jnp.bfloat16),
                   preferred_element_type=jnp.float32).astype(jnp.bfloat16)
    r = jnp.einsum("oh,phc->poc", ry.astype(jnp.bfloat16), t,
                   preferred_element_type=jnp.float32)
    inv_std = 1.0 / std
    ch = jnp.arange(nc) % C
    sim = r * inv_std[ch][:, None, None] + (-mean * inv_std)[ch][:, None, None]
    sim = sim.reshape(N, C, crop_size, crop_size)
    err_sim = float(jnp.max(jnp.abs(out[0] - sim)))
    assert err_sim < 2e-3, f"kernel deviates from bf16 reference: {err_sim}"

    # (2) Sanity check against the full-f32 pipeline (Resize -> Normalize);
    #     tolerance covers bf16 operand rounding.
    ref = jnp.einsum("oh,nchw,jw->ncoj", ry, image, rx)
    ref = (ref - mean[None, :, None, None]) / std[None, :, None, None]
    err_f32 = float(jnp.max(jnp.abs(out[0] - ref)))
    assert err_f32 < 7.5e-2, f"max abs error vs f32 reference {err_f32}"

    # All `count` copies are identical (deterministic configuration).
    assert float(jnp.max(jnp.abs(out[1] - out[0]))) == 0.0

    print("KERNEL_OK")
</pallas_src>

<mosaic_0001>
module attributes {stable_mosaic.version = 11 : i64} {
  func.func @_resize_normalize_kernel(%arg0: i32, %arg1: memref<3x32x32xbf16, #tpu.memory_space<vmem>>, %arg2: memref<32x16xbf16, #tpu.memory_space<vmem>>, %arg3: memref<3x16x32xbf16, #tpu.memory_space<vmem>>, %arg4: memref<3x2x1x16xf32, #tpu.memory_space<vmem>>, %arg5: memref<3x16x16xf32, #tpu.memory_space<vmem>>) attributes {dimension_semantics = [#tpu.dimension_semantics<parallel>], iteration_bounds = array<i64: 2>, scalar_prefetch = 0 : i64, scratch_operands = 0 : i64, tpu.core_type = #tpu.core_type<tc>, window_params = [{transform_indices = @transform_0, window_bounds = array<i64: 3, 32, 32>}, {pipeline_mode = #tpu.pipeline_mode<synchronous>, transform_indices = @transform_1, window_bounds = array<i64: 32, 16>}, {pipeline_mode = #tpu.pipeline_mode<synchronous>, transform_indices = @transform_2, window_bounds = array<i64: 3, 16, 32>}, {transform_indices = @transform_3, window_bounds = array<i64: 3, 2, 1, 16>}, {transform_indices = @transform_4, window_bounds = array<i64: 3, 16, 16>}]} {
    %c0 = arith.constant 0 : index
    %c0_0 = arith.constant 0 : index
    %c0_1 = arith.constant 0 : index
    %0 = vector.load %arg1[%c0, %c0_0, %c0_1] : memref<3x32x32xbf16, #tpu.memory_space<vmem>>, vector<3x32x32xbf16>
    %1 = vector.shape_cast %0 : vector<3x32x32xbf16> to vector<96x32xbf16>
    %c0_2 = arith.constant 0 : index
    %c0_3 = arith.constant 0 : index
    %2 = vector.load %arg2[%c0_2, %c0_3] : memref<32x16xbf16, #tpu.memory_space<vmem>>, vector<32x16xbf16>
    %cst = arith.constant dense<0.000000e+00> : vector<96x16xf32>
    %3 = tpu.matmul %1, %2, %cst {dimension_numbers = #tpu.dot_dimension_numbers<[1], [0], [0], [1], [0, 0, 1, 1], [], []>} : vector<96x32xbf16>, vector<32x16xbf16>, vector<96x16xf32> -> vector<96x16xf32>
    %4 = vector.shape_cast %3 : vector<96x16xf32> to vector<3x32x16xf32>
    %5 = arith.truncf %4 : vector<3x32x16xf32> to vector<3x32x16xbf16>
    %c0_4 = arith.constant 0 : index
    %c0_5 = arith.constant 0 : index
    %c0_6 = arith.constant 0 : index
    %6 = vector.load %arg3[%c0_4, %c0_5, %c0_6] : memref<3x16x32xbf16, #tpu.memory_space<vmem>>, vector<3x16x32xbf16>
    %cst_7 = arith.constant dense<0.000000e+00> : vector<3x16x16xf32>
    %7 = tpu.matmul %6, %5, %cst_7 {dimension_numbers = #tpu.dot_dimension_numbers<[2], [1], [1], [2], [0, 0, 0, 1, 1, 2], [0], [0]>} : vector<3x16x32xbf16>, vector<3x32x16xbf16>, vector<3x16x16xf32> -> vector<3x16x16xf32>
    %c0_8 = arith.constant 0 : index
    %c0_9 = arith.constant 0 : index
    %c0_10 = arith.constant 0 : index
    %c0_11 = arith.constant 0 : index
    %8 = vector.load %arg4[%c0_8, %c0_9, %c0_10, %c0_11] : memref<3x2x1x16xf32, #tpu.memory_space<vmem>>, vector<3x2x1x16xf32>
    %9 = vector.extract_strided_slice %8 {offsets = [0, 0, 0, 0], sizes = [3, 1, 1, 16], strides = [1, 1, 1, 1]} : vector<3x2x1x16xf32> to vector<3x1x1x16xf32>
    %10 = vector.shape_cast %9 : vector<3x1x1x16xf32> to vector<3x1x16xf32>
    %11 = vector.extract_strided_slice %8 {offsets = [0, 1, 0, 0], sizes = [3, 1, 1, 16], strides = [1, 1, 1, 1]} : vector<3x2x1x16xf32> to vector<3x1x1x16xf32>
    %12 = vector.shape_cast %11 : vector<3x1x1x16xf32> to vector<3x1x16xf32>
    %13 = vector.broadcast %10 : vector<3x1x16xf32> to vector<3x16x16xf32>
    %14 = arith.mulf %7, %13 : vector<3x16x16xf32>
    %15 = vector.broadcast %12 : vector<3x1x16xf32> to vector<3x16x16xf32>
    %16 = arith.addf %14, %15 : vector<3x16x16xf32>
    %c0_12 = arith.constant 0 : index
    %c0_13 = arith.constant 0 : index
    %c0_14 = arith.constant 0 : index
    %17 = vector.load %arg5[%c0_12, %c0_13, %c0_14] : memref<3x16x16xf32, #tpu.memory_space<vmem>>, vector<3x16x16xf32>
    tpu.vector_store %arg5[%c0_12, %c0_13, %c0_14], %16 {strides = array<i32>} : memref<3x16x16xf32, #tpu.memory_space<vmem>>, vector<3x16x16xf32>,
    return
  }
  func.func @transform_0(%arg0: i32) -> (i32, i32, i32) {
    %c0_i32 = arith.constant 0 : i32
    %c0_i32_0 = arith.constant 0 : i32
    %c0_i32_1 = arith.constant 0 : i32
    return %arg0, %c0_i32, %c0_i32_0 : i32, i32, i32
  }
  func.func @transform_1(%arg0: i32) -> (i32, i32) {
    %c0_i32 = arith.constant 0 : i32
    %c0_i32_0 = arith.constant 0 : i32
    %c0_i32_1 = arith.constant 0 : i32
    return %c0_i32, %c0_i32_0 : i32, i32
  }
  func.func @transform_2(%arg0: i32) -> (i32, i32, i32) {
    %c0_i32 = arith.constant 0 : i32
    %c0_i32_0 = arith.constant 0 : i32
    %c0_i32_1 = arith.constant 0 : i32
    %c0_i32_2 = arith.constant 0 : i32
    return %c0_i32, %c0_i32_0, %c0_i32_1 : i32, i32, i32
  }
  func.func @transform_3(%arg0: i32) -> (i32, i32, i32, i32) {
    %c0_i32 = arith.constant 0 : i32
    %c0_i32_0 = arith.constant 0 : i32
    %c0_i32_1 = arith.constant 0 : i32
    %c0_i32_2 = arith.constant 0 : i32
    return %arg0, %c0_i32, %c0_i32_0, %c0_i32_1 : i32, i32, i32, i32
  }
  func.func @transform_4(%arg0: i32) -> (i32, i32, i32) {
    %c0_i32 = arith.constant 0 : i32
    %c0_i32_0 = arith.constant 0 : i32
    %c0_i32_1 = arith.constant 0 : i32
    return %arg0, %c0_i32, %c0_i32_0 : i32, i32, i32
  }
}

module attributes {stable_mosaic.version = 11 : i64} {
  func.func @_resize_normalize_kernel(%arg0: i32, %arg1: memref<3x32x32xbf16, #tpu.memory_space<vmem>>, %arg2: memref<32x16xbf16, #tpu.memory_space<vmem>>, %arg3: memref<3x16x32xbf16, #tpu.memory_space<vmem>>, %arg4: memref<3x2x1x16xf32, #tpu.memory_space<vmem>>, %arg5: memref<3x16x16xf32, #tpu.memory_space<vmem>>) attributes {dimension_semantics = [#tpu.dimension_semantics<parallel>], iteration_bounds = array<i64: 2>, scalar_prefetch = 0 : i64, scratch_operands = 0 : i64, tpu.core_type = #tpu.core_type<tc>, window_params = [{transform_indices = @transform_0, window_bounds = array<i64: 3, 32, 32>}, {pipeline_mode = #tpu.pipeline_mode<synchronous>, transform_indices = @transform_1, window_bounds = array<i64: 32, 16>}, {pipeline_mode = #tpu.pipeline_mode<synchronous>, transform_indices = @transform_2, window_bounds = array<i64: 3, 16, 32>}, {transform_indices = @transform_3, window_bounds = array<i64: 3, 2, 1, 16>}, {transform_indices = @transform_4, window_bounds = array<i64: 3, 16, 16>}]} {
    %c0 = arith.constant 0 : index
    %c0_0 = arith.constant 0 : index
    %c0_1 = arith.constant 0 : index
    %0 = vector.load %arg1[%c0, %c0_0, %c0_1] : memref<3x32x32xbf16, #tpu.memory_space<vmem>>, vector<3x32x32xbf16>
    %1 = vector.shape_cast %0 : vector<3x32x32xbf16> to vector<96x32xbf16>
    %c0_2 = arith.constant 0 : index
    %c0_3 = arith.constant 0 : index
    %2 = vector.load %arg2[%c0_2, %c0_3] : memref<32x16xbf16, #tpu.memory_space<vmem>>, vector<32x16xbf16>
    %cst = arith.constant dense<0.000000e+00> : vector<96x16xf32>
    %3 = tpu.matmul %1, %2, %cst {dimension_numbers = #tpu.dot_dimension_numbers<[1], [0], [0], [1], [0, 0, 1, 1], [], []>} : vector<96x32xbf16>, vector<32x16xbf16>, vector<96x16xf32> -> vector<96x16xf32>
    %4 = vector.shape_cast %3 : vector<96x16xf32> to vector<3x32x16xf32>
    %5 = arith.truncf %4 : vector<3x32x16xf32> to vector<3x32x16xbf16>
    %c0_4 = arith.constant 0 : index
    %c0_5 = arith.constant 0 : index
    %c0_6 = arith.constant 0 : index
    %6 = vector.load %arg3[%c0_4, %c0_5, %c0_6] : memref<3x16x32xbf16, #tpu.memory_space<vmem>>, vector<3x16x32xbf16>
    %cst_7 = arith.constant dense<0.000000e+00> : vector<3x16x16xf32>
    %7 = tpu.matmul %6, %5, %cst_7 {dimension_numbers = #tpu.dot_dimension_numbers<[2], [1], [1], [2], [0, 0, 0, 1, 1, 2], [0], [0]>} : vector<3x16x32xbf16>, vector<3x32x16xbf16>, vector<3x16x16xf32> -> vector<3x16x16xf32>
    %c0_8 = arith.constant 0 : index
    %c0_9 = arith.constant 0 : index
    %c0_10 = arith.constant 0 : index
    %c0_11 = arith.constant 0 : index
    %8 = vector.load %arg4[%c0_8, %c0_9, %c0_10, %c0_11] : memref<3x2x1x16xf32, #tpu.memory_space<vmem>>, vector<3x2x1x16xf32>
    %9 = vector.extract_strided_slice %8 {offsets = [0, 0, 0, 0], sizes = [3, 1, 1, 16], strides = [1, 1, 1, 1]} : vector<3x2x1x16xf32> to vector<3x1x1x16xf32>
    %10 = vector.shape_cast %9 : vector<3x1x1x16xf32> to vector<3x1x16xf32>
    %11 = vector.extract_strided_slice %8 {offsets = [0, 1, 0, 0], sizes = [3, 1, 1, 16], strides = [1, 1, 1, 1]} : vector<3x2x1x16xf32> to vector<3x1x1x16xf32>
    %12 = vector.shape_cast %11 : vector<3x1x1x16xf32> to vector<3x1x16xf32>
    %13 = vector.broadcast %10 : vector<3x1x16xf32> to vector<3x16x16xf32>
    %14 = arith.mulf %7, %13 : vector<3x16x16xf32>
    %15 = vector.broadcast %12 : vector<3x1x16xf32> to vector<3x16x16xf32>
    %16 = arith.addf %14, %15 : vector<3x16x16xf32>
    %c0_12 = arith.constant 0 : index
    %c0_13 = arith.constant 0 : index
    %c0_14 = arith.constant 0 : index
    %17 = vector.load %arg5[%c0_12, %c0_13, %c0_14] : memref<3x16x16xf32, #tpu.memory_space<vmem>>, vector<3x16x16xf32>
    tpu.vector_store %arg5[%c0_12, %c0_13, %c0_14], %16 {strides = array<i32>} : memref<3x16x16xf32, #tpu.memory_space<vmem>>, vector<3x16x16xf32>,
    return
  }
  func.func @transform_0(%arg0: i32) -> (i32, i32, i32) {
    %c0_i32 = arith.constant 0 : i32
    %c0_i32_0 = arith.constant 0 : i32
    %c0_i32_1 = arith.constant 0 : i32
    return %arg0, %c0_i32, %c0_i32_0 : i32, i32, i32
  }
  func.func @transform_1(%arg0: i32) -> (i32, i32) {
    %c0_i32 = arith.constant 0 : i32
    %c0_i32_0 = arith.constant 0 : i32
    %c0_i32_1 = arith.constant 0 : i32
    return %c0_i32, %c0_i32_0 : i32, i32
  }
  func.func @transform_2(%arg0: i32) -> (i32, i32, i32) {
    %c0_i32 = arith.constant 0 : i32
    %c0_i32_0 = arith.constant 0 : i32
    %c0_i32_1 = arith.constant 0 : i32
    %c0_i32_2 = arith.constant 0 : i32
    return %c0_i32, %c0_i32_0, %c0_i32_1 : i32, i32, i32
  }
  func.func @transform_3(%arg0: i32) -> (i32, i32, i32, i32) {
    %c0_i32 = arith.constant 0 : i32
    %c0_i32_0 = arith.constant 0 : i32
    %c0_i32_1 = arith.constant 0 : i32
    %c0_i32_2 = arith.constant 0 : i32
    return %arg0, %c0_i32, %c0_i32_0, %c0_i32_1 : i32, i32, i32, i32
  }
  func.func @transform_4(%arg0: i32) -> (i32, i32, i32) {
    %c0_i32 = arith.constant 0 : i32
    %c0_i32_0 = arith.constant 0 : i32
    %c0_i32_1 = arith.constant 0 : i32
    return %arg0, %c0_i32, %c0_i32_0 : i32, i32, i32
  }
}

</mosaic_0001>

<llo_original>
// kernel: tpu_custom_call.1
$region0: #{tpu_custom_call.1}
  #allocation0 [shape = 'u32[]', space=smem, size = 0x4, offset = 0x4, fixed_abs, tag = 'smem constant byte address 0x4 - core index']
  #allocation1 [shape = 'u32[144,128]{1,0:T(1,128)}', space=vmem, size = 0x12000, scoped, tag = 'internal scratch']
  %s0 = inlined_call_operand.hbm [shape: bf16[6,32,32], index: 0, kind: input, shape index: {}]
  %s1 = inlined_call_operand.vmem [shape: bf16[32,16], index: 1, kind: input, shape index: {}]
  %s2 = inlined_call_operand.vmem [shape: bf16[3,16,32], index: 2, kind: input, shape index: {}]
  %s3 = inlined_call_operand.hbm [shape: f32[6,2,1,16], index: 3, kind: input, shape index: {}]
  %s4 = inlined_call_operand.hbm [shape: f32[6,16,16], index: 4, kind: output, shape index: {}]
  %s5 = sld [smem:[#allocation0]]
  $region57: #{tpu_custom_call.1} parent=0
    _
  %s7 = ssub.s32 1, %s5
  %s8 = scalar_select 0, %s7, %s5
  $region1: #{tpu_custom_call.1} parent=0
    #allocation2 [shape = 'u8[49152]{0}', space=vmem, size = 0xc000, scoped, tag = 'input window, operand 0']
    #allocation3 [shape = 's32[2]{0}', space=sflag, size = 0x8, scoped, tag = 'scoped memory for tpu_custom_call.1']
    #allocation4 [shape = 's32[2]{0}', space=sflag, size = 0x8, scoped, tag = 'scoped memory for tpu_custom_call.1']
    #allocation5 [shape = 'u8[6144]{0}', space=vmem, size = 0x1800, scoped, tag = 'input window, operand 3']
    #allocation6 [shape = 's32[2]{0}', space=sflag, size = 0x8, scoped, tag = 'scoped memory for tpu_custom_call.1']
    #allocation7 [shape = 'u8[49152]{0}', space=vmem, size = 0xc000, scoped, tag = 'output window, operand 0']
    %9 = vsyncpa [#allocation3], 0
    %s10 = scalar_lea.sflag [#allocation3], 1
    %11 = vsyncpa %s10, 0
    %12 = vsyncpa [#allocation6], 0
    %s13 = scalar_lea.sflag [#allocation6], 1
    %14 = vsyncpa %s13, 0
    %15 = vsyncpa [#allocation4], 0
    %s16 = scalar_lea.sflag [#allocation4], 1
    %17 = vsyncpa %s16, 0
    loop: start=0, step=1, limit=4
    $region2: #{tpu_custom_call.1} parent=1 // loop_pre_header
      _
    $region3: #{tpu_custom_call.1} parent=1 // loop_header
      %s19 = sphi 0, %s23
      %p20 = scmp.ge.s32.totalorder %s19, 4
      %s29 = sphi 0, %s31
      %s32 = sphi 0, %s29
      %s33 = sphi 0, %s32
      %s49 = sphi 0, %s33
      %s53 = sphi 0, %s53
      %s55 = sphi 0, %s53
      %s56 = sphi 0, %s55
      %s70 = sphi 0, %s56
      %s74 = sphi 0, %s74
      %s76 = sphi 0, %s74
      %s77 = sphi 0, %s76
      %s91 = sphi 0, %s77
      %s97 = sphi 0, %s99
      %s100 = sphi 0, %s97
      %s101 = sphi 0, %s100
      %s117 = sphi 0, %s101
      %s123 = sphi 0, %s125
      %s126 = sphi 0, %s123
      %s127 = sphi 0, %s126
      %s143 = sphi 0, %s127
    $region4: #{tpu_custom_call.1} parent=1 // loop_header_branch
      %22 = sbr.rel (%p20) target = $region8
    $region5: #{tpu_custom_call.1} parent=1 // loop_body
      %s24 = ssub.s32 %s19, 1
      %s25 = ssub.s32 %s19, 2
      %s26 = sadd.s32 %s19, 1
      %s27 = ssub.s32 %s19, %s26
      %p28 = scmp.eq.s32.totalorder %s27, 0
      %s30 = sadd.s32 %s29, 1
      %s31 = scalar_select %p28, %s29, %s30
      %p34 = pneg %p28
      %p35 = scmp.eq.s32.totalorder %s19, 1
      %p36 = por %p34, %p35
      %p37 = scmp.ne.s32.totalorder %s29, %s32
      %p38 = scmp.eq.s32.totalorder %s19, 0
      %p39 = por %p37, %p38
      %p40 = scmp.ne.s32.totalorder %s29, %s32
      %p41 = scmp.eq.s32.totalorder %s24, 1
      %p42 = por %p40, %p41
      %p43 = scmp.ne.s32.totalorder %s32, %s33
      %p44 = scmp.eq.s32.totalorder %s24, 0
      %p45 = por %p43, %p44
      %p46 = scmp.ne.s32.totalorder %s32, %s33
      %p47 = scmp.eq.s32.totalorder %s25, 1
      %p48 = por %p46, %p47
      %p50 = scmp.ne.s32.totalorder %s33, %s49
      %p51 = scmp.eq.s32.totalorder %s25, 0
      %p52 = por %p50, %p51
      %s54 = sadd.s32 %s53, 1
      %p57 = scmp.eq.s32.totalorder %s19, 1
      %p58 = scmp.ne.s32.totalorder %s53, %s55
      %p59 = scmp.eq.s32.totalorder %s19, 0
      %p60 = por %p58, %p59
      %p61 = scmp.ne.s32.totalorder %s53, %s55
      %p62 = scmp.eq.s32.totalorder %s24, 1
      %p63 = por %p61, %p62
      %p64 = scmp.ne.s32.totalorder %s55, %s56
      %p65 = scmp.eq.s32.totalorder %s24, 0
      %p66 = por %p64, %p65
      %p67 = scmp.ne.s32.totalorder %s55, %s56
      %p68 = scmp.eq.s32.totalorder %s25, 1
      %p69 = por %p67, %p68
      %p71 = scmp.ne.s32.totalorder %s56, %s70
      %p72 = scmp.eq.s32.totalorder %s25, 0
      %p73 = por %p71, %p72
      %s75 = sadd.s32 %s74, 1
      %p78 = scmp.eq.s32.totalorder %s19, 1
      %p79 = scmp.ne.s32.totalorder %s74, %s76
      %p80 = scmp.eq.s32.totalorder %s19, 0
      %p81 = por %p79, %p80
      %p82 = scmp.ne.s32.totalorder %s74, %s76
      %p83 = scmp.eq.s32.totalorder %s24, 1
      %p84 = por %p82, %p83
      %p85 = scmp.ne.s32.totalorder %s76, %s77
      %p86 = scmp.eq.s32.totalorder %s24, 0
      %p87 = por %p85, %p86
      %p88 = scmp.ne.s32.totalorder %s76, %s77
      %p89 = scmp.eq.s32.totalorder %s25, 1
      %p90 = por %p88, %p89
      %p92 = scmp.ne.s32.totalorder %s77, %s91
      %p93 = scmp.eq.s32.totalorder %s25, 0
      %p94 = por %p92, %p93
      %s95 = ssub.s32 %s19, %s26
      %p96 = scmp.eq.s32.totalorder %s95, 0
      %s98 = sadd.s32 %s97, 1
      %s99 = scalar_select %p96, %s97, %s98
      %p102 = pneg %p96
      %p103 = scmp.eq.s32.totalorder %s19, 1
      %p104 = por %p102, %p103
      %p105 = scmp.ne.s32.totalorder %s97, %s100
      %p106 = scmp.eq.s32.totalorder %s19, 0
      %p107 = por %p105, %p106
      %p108 = scmp.ne.s32.totalorder %s97, %s100
      %p109 = scmp.eq.s32.totalorder %s24, 1
      %p110 = por %p108, %p109
      %p111 = scmp.ne.s32.totalorder %s100, %s101
      %p112 = scmp.eq.s32.totalorder %s24, 0
      %p113 = por %p111, %p112
      %p114 = scmp.ne.s32.totalorder %s100, %s101
      %p115 = scmp.eq.s32.totalorder %s25, 1
      %p116 = por %p114, %p115
      %p118 = scmp.ne.s32.totalorder %s101, %s117
      %p119 = scmp.eq.s32.totalorder %s25, 0
      %p120 = por %p118, %p119
      %s121 = ssub.s32 %s19, %s26
      %p122 = scmp.eq.s32.totalorder %s121, 0
      %s124 = sadd.s32 %s123, 1
      %s125 = scalar_select %p122, %s123, %s124
      %p128 = pneg %p122
      %p129 = scmp.eq.s32.totalorder %s19, 1
      %p130 = por %p128, %p129
      %p131 = scmp.ne.s32.totalorder %s123, %s126
      %p132 = scmp.eq.s32.totalorder %s19, 0
      %p133 = por %p131, %p132
      %p134 = scmp.ne.s32.totalorder %s123, %s126
      %p135 = scmp.eq.s32.totalorder %s24, 1
      %p136 = por %p134, %p135
      %p137 = scmp.ne.s32.totalorder %s126, %s127
      %p138 = scmp.eq.s32.totalorder %s24, 0
      %p139 = por %p137, %p138
      %p140 = scmp.ne.s32.totalorder %s126, %s127
      %p141 = scmp.eq.s32.totalorder %s25, 1
      %p142 = por %p140, %p141
      %p144 = scmp.ne.s32.totalorder %s127, %s143
      %p145 = scmp.eq.s32.totalorder %s25, 0
      %p146 = por %p144, %p145
      %p147 = scmp.le.s32.totalorder 1, %s19
      %p148 = scmp.lt.s32.totalorder %s19, 3
      %p149 = pnand %p147, %p148
      %p150 = pneg %p149
      // Predicated region
      $region9: #{tpu_custom_call.1} parent=5 // pred_check
        _
      $region10: #{tpu_custom_call.1} parent=5 // pred_check_branch
        %152 = sbr.rel (%p149) target = $region12
      $region11: #{tpu_custom_call.1} parent=5 // pred_region
        %s153 = ssub.s32 %s19, 1
        // Predicated region
        $region13: #{tpu_custom_call.1} parent=11 // pred_check
          %p154 = pneg %p66
        $region14: #{tpu_custom_call.1} parent=11 // pred_check_branch
          %156 = sbr.rel (%p154) target = $region16
        $region15: #{tpu_custom_call.1} parent=11 // pred_region
          _
        $region16: #{tpu_custom_call.1} parent=11 // pred_fallthru
          _
        // Predicated region
        $region17: #{tpu_custom_call.1} parent=11 // pred_check
          %p157 = pneg %p87
        $region18: #{tpu_custom_call.1} parent=11 // pred_check_branch
          %159 = sbr.rel (%p157) target = $region20
        $region19: #{tpu_custom_call.1} parent=11 // pred_region
          _
        $region20: #{tpu_custom_call.1} parent=11 // pred_fallthru
          _
      $region12: #{tpu_custom_call.1} parent=5 // pred_fallthru
        _
      %p160 = scmp.lt.s32.totalorder %s19, 2
      // Predicated region
      $region21: #{tpu_custom_call.1} parent=5 // pred_check
        %p161 = pneg %p160
      $region22: #{tpu_custom_call.1} parent=5 // pred_check_branch
        %163 = sbr.rel (%p161) target = $region24
      $region23: #{tpu_custom_call.1} parent=5 // pred_region
        // Predicated region
        $region25: #{tpu_custom_call.1} parent=23 // pred_check
          %p164 = pneg %p39
        $region26: #{tpu_custom_call.1} parent=23 // pred_check_branch
          %166 = sbr.rel (%p164) target = $region28
        $region27: #{tpu_custom_call.1} parent=23 // pred_region
          %s167 = sand.u32 %s29, 1
          %s168 = scalar_lea.sflag [#allocation3], %s167
          %s169 = sand.u32 %s29, 1
          %s170 = smul.addr %s169, 48
          %s171 = scalar_lea.vmem [#allocation2], %s170
          %s172 = smul.u32 3, %s19
          %s174 = ssub.s32 768, 768
          %175 = vsyncadd %s168, %s174
          %s176 = smul.addr %s172, 4
          %s177 = smul.addr %s176, 64
          %s178 = scalar_lea.hbm %s0, %s177
          %s179 = sshll.u32 %s171, 4
          %s180 = int_to_ptr.vmem [resolvable:$true] %s179
          %185 = dma.hbm_to_vmem [thread:$0]  %s178, 768, %s180, %s168, 64, 64, 4
        $region28: #{tpu_custom_call.1} parent=23 // pred_fallthru
          _
        // Predicated region
        $region29: #{tpu_custom_call.1} parent=23 // pred_check
          %p186 = pneg %p107
        $region30: #{tpu_custom_call.1} parent=23 // pred_check_branch
          %188 = sbr.rel (%p186) target = $region32
        $region31: #{tpu_custom_call.1} parent=23 // pred_region
          %s189 = sand.u32 %s97, 1
          %s190 = scalar_lea.sflag [#allocation6], %s189
          %s191 = sand.u32 %s97, 1
          %s192 = smul.addr %s191, 6
          %s193 = scalar_lea.vmem [#allocation5], %s192
          %s194 = smul.u32 3, %s19
          %s196 = ssub.s32 96, 96
          %197 = vsyncadd %s190, %s196
          %s198 = smul.addr %s194, 2
          %s199 = smul.addr %s198, 16
          %s200 = scalar_lea.hbm %s3, %s199
          %s201 = sshll.u32 %s193, 4
          %s202 = int_to_ptr.vmem [resolvable:$true] %s201
          %207 = dma.hbm_to_vmem [thread:$0]  %s200, 96, %s202, %s190, 16, 16, 1
        $region32: #{tpu_custom_call.1} parent=23 // pred_fallthru
          _
      $region24: #{tpu_custom_call.1} parent=5 // pred_fallthru
        _
      %p208 = scmp.le.s32.totalorder 1, %s19
      %p209 = scmp.lt.s32.totalorder %s19, 3
      %p210 = pnand %p208, %p209
      %p211 = pneg %p210
      // Predicated region
      $region33: #{tpu_custom_call.1} parent=5 // pred_check
        _
      $region34: #{tpu_custom_call.1} parent=5 // pred_check_branch
        %213 = sbr.rel (%p210) target = $region36
      $region35: #{tpu_custom_call.1} parent=5 // pred_region
        %s214 = ssub.s32 %s19, 1
        %s215 = sand.u32 %s32, 1
        %s216 = scalar_lea.sflag [#allocation3], %s215
        %s217 = sand.u32 %s32, 1
        %s218 = smul.addr %s217, 48
        %s219 = scalar_lea.vmem [#allocation2], %s218
        // Predicated region
        $region37: #{tpu_custom_call.1} parent=35 // pred_check
          %p220 = pneg %p45
        $region38: #{tpu_custom_call.1} parent=35 // pred_check_branch
          %222 = sbr.rel (%p220) target = $region40
        $region39: #{tpu_custom_call.1} parent=35 // pred_region
          %223 = dma.done %s216, 768
        $region40: #{tpu_custom_call.1} parent=35 // pred_fallthru
          _
        %s224 = sand.u32 %s100, 1
        %s225 = scalar_lea.sflag [#allocation6], %s224
        %s226 = sand.u32 %s100, 1
        %s227 = smul.addr %s226, 6
        %s228 = scalar_lea.vmem [#allocation5], %s227
        // Predicated region
        $region41: #{tpu_custom_call.1} parent=35 // pred_check
          %p229 = pneg %p113
        $region42: #{tpu_custom_call.1} parent=35 // pred_check_branch
          %231 = sbr.rel (%p229) target = $region44
        $region43: #{tpu_custom_call.1} parent=35 // pred_region
          %232 = dma.done %s225, 96
        $region44: #{tpu_custom_call.1} parent=35 // pred_fallthru
          _
        %s233 = sand.u32 %s32, 1
        %s234 = scalar_lea.sflag [#allocation3], %s233
        %s235 = sand.u32 %s32, 1
        %s236 = smul.addr %s235, 48
        %s237 = scalar_lea.vmem [#allocation2], %s236
        %p238 = pneg %p45
        %p239 = pneg %p42
        %p240 = pneg %p66
        %p241 = pneg %p63
        %p242 = pneg %p87
        %p243 = pneg %p84
        %s244 = sand.u32 %s100, 1
        %s245 = scalar_lea.sflag [#allocation6], %s244
        %s246 = sand.u32 %s100, 1
        %s247 = smul.addr %s246, 6
        %s248 = scalar_lea.vmem [#allocation5], %s247
        %p249 = pneg %p113
        %p250 = pneg %p110
        %p251 = pneg %p139
        %p252 = pneg %p136
        %s253 = sand.u32 %s126, 1
        %s254 = scalar_lea.sflag [#allocation4], %s253
        %s255 = sand.u32 %s126, 1
        %s256 = smul.addr %s255, 48
        %s257 = scalar_lea.vmem [#allocation7], %s256
        %s258 = smul.u32 3, %s24
        %s259 = smul.u32 3, %s24
        %s260 = smul.u32 3, %s24
        %v262 = vld [vmem:[%s219] sm:$0xf]
        %v263 = vld [vmem:[%s219 + $0x4] sm:$0xf]
        %v264 = vld [vmem:[%s219 + $0x8] sm:$0xf]
        %v265 = vld [vmem:[%s219 + $0xc] sm:$0xf]
        %v266 = vld [vmem:[%s219 + $0x10] sm:$0xf]
        %v267 = vld [vmem:[%s219 + $0x14] sm:$0xf]
        %v268 = vld [vmem:[%s219 + $0x18] sm:$0xf]
        %v269 = vld [vmem:[%s219 + $0x1c] sm:$0xf]
        %v270 = vld [vmem:[%s219 + $0x20] sm:$0xf]
        %v271 = vld [vmem:[%s219 + $0x24] sm:$0xf]
        %v272 = vld [vmem:[%s219 + $0x28] sm:$0xf]
        %v273 = vld [vmem:[%s219 + $0x2c] sm:$0xf]
        %v274 = vld [vmem:[%s1] sm:$0xf]
        %v275 = vld [vmem:[%s1 + $0x4] sm:$0xf]
        %v276 = vld [vmem:[%s1 + $0x8] sm:$0xf]
        %v277 = vld [vmem:[%s1 + $0xc] sm:$0xf]
        %v290 = vunpack.c.l.b16 %v262
        %v291 = vunpack.c.l.b16 %v263
        %v292 = vunpack.c.l.b16 %v264
        %v293 = vunpack.c.l.b16 %v265
        %v294 = vunpack.c.l.b16 %v266
        %v295 = vunpack.c.l.b16 %v267
        %v296 = vunpack.c.l.b16 %v268
        %v297 = vunpack.c.l.b16 %v269
        %v298 = vunpack.c.l.b16 %v270
        %v299 = vunpack.c.l.b16 %v271
        %v300 = vunpack.c.l.b16 %v272
        %v301 = vunpack.c.l.b16 %v273
        %v302 = vpack.c.b16 %v291, %v290
        %v303 = vpack.c.b16 %v293, %v292
        %v304 = vpack.c.b16 %v295, %v294
        %v305 = vpack.c.b16 %v297, %v296
        %v306 = vpack.c.b16 %v299, %v298
        %v307 = vpack.c.b16 %v301, %v300
        %v312 = vunpack.c.l.b16 %v274
        %v313 = vunpack.c.l.b16 %v275
        %v314 = vunpack.c.l.b16 %v276
        %v315 = vunpack.c.l.b16 %v277
        %v316 = vpack.c.b16 %v313, %v312
        %v317 = vpack.c.b16 %v315, %v314
        %vm320 = vcmask 261120
        %v322 = vsel %vm320, %v302, 0
        %v325 = vsel %vm320, %v303, 0
        %v328 = vsel %vm320, %v304, 0
        %v331 = vsel %vm320, %v305, 0
        %v334 = vsel %vm320, %v306, 0
        %v337 = vsel %vm320, %v307, 0
        %339 = vmatprep.subr.bf16.mxu0 0
        %340 = vmatpush1.bf16.msra.mxu0 0
        %341 = vmatprep.subr.bf16.mxu0 0
        %342 = vmatpush1.bf16.msra.mxu0 0
        %343 = vmatprep.subr.bf16.mxu0 0
        %344 = vmatpush1.bf16.msra.mxu0 0
        %345 = vmatprep.subr.bf16.mxu0 0
        %346 = vmatpush1.bf16.msra.mxu0 0
        %347 = vmatprep.subr.bf16.mxu0 0
        %348 = vmatpush1.bf16.msra.mxu0 0
        %349 = vmatprep.subr.bf16.mxu0 0
        %350 = vmatpush1.bf16.msra.mxu0 0
        %351 = vmatprep.subr.bf16.mxu0 0
        %352 = vmatpush1.bf16.msra.mxu0 %v317
        %353 = vmatprep.subr.bf16.mxu0 0
        %354 = vmatpush1.bf16.msra.mxu0 %v316
        %355 = vmatprep.subr.bf16.mxu0 0
        %356 = vmatpush2.bf16.msra.mxu0 0
        %357 = vmatprep.subr.bf16.mxu0 0
        %358 = vmatpush2.bf16.msra.mxu0 0
        %359 = vmatprep.subr.bf16.mxu0 0
        %360 = vmatpush2.bf16.msra.mxu0 0
        %361 = vmatprep.subr.bf16.mxu0 0
        %362 = vmatpush2.bf16.msra.mxu0 0
        %363 = vmatprep.subr.bf16.mxu0 0
        %364 = vmatpush2.bf16.msra.mxu0 0
        %365 = vmatprep.subr.bf16.mxu0 0
        %366 = vmatpush2.bf16.msra.mxu0 0
        %367 = vmatprep.subr.bf16.mxu0 0
        %368 = vmatpush2.bf16.msra.mxu0 0
        %369 = vmatprep.subr.bf16.mxu0 0
        %370 = vmatpush2.bf16.msra.mxu0 0
        %371 = vmatprep.mubr.bf16.mxu0 0
        %372 = vmatmul.mubr.bf16.gmra.mxu0 %v322
        %v373 = vpop.f32.mrf.mxu0
        %v374 = vadd.f32 0.0, %v373
        %v375 = vpop.f32.mrf.mxu0
        %v376 = vpop.f32.mrf.mxu0
        %v377 = vadd.f32 0.0, %v376
        %v378 = vpop.f32.mrf.mxu0
        %379 = vmatprep.mubr.bf16.mxu0 0
        %380 = vmatmul.mubr.bf16.gmra.mxu0 %v325
        %v381 = vpop.f32.mrf.mxu0
        %v382 = vadd.f32 0.0, %v381
        %v383 = vpop.f32.mrf.mxu0
        %v384 = vpop.f32.mrf.mxu0
        %v385 = vadd.f32 0.0, %v384
        %v386 = vpop.f32.mrf.mxu0
        %387 = vmatprep.mubr.bf16.mxu0 0
        %388 = vmatmul.mubr.bf16.gmra.mxu0 %v328
        %v389 = vpop.f32.mrf.mxu0
        %v390 = vadd.f32 0.0, %v389
        %v391 = vpop.f32.mrf.mxu0
        %v392 = vpop.f32.mrf.mxu0
        %v393 = vadd.f32 0.0, %v392
        %v394 = vpop.f32.mrf.mxu0
        %395 = vmatprep.mubr.bf16.mxu0 0
        %396 = vmatmul.mubr.bf16.gmra.mxu0 %v331
        %v397 = vpop.f32.mrf.mxu0
        %v398 = vadd.f32 0.0, %v397
        %v399 = vpop.f32.mrf.mxu0
        %v400 = vpop.f32.mrf.mxu0
        %v401 = vadd.f32 0.0, %v400
        %v402 = vpop.f32.mrf.mxu0
        %403 = vmatprep.mubr.bf16.mxu0 0
        %404 = vmatmul.mubr.bf16.gmra.mxu0 %v334
        %v405 = vpop.f32.mrf.mxu0
        %v406 = vadd.f32 0.0, %v405
        %v407 = vpop.f32.mrf.mxu0
        %v408 = vpop.f32.mrf.mxu0
        %v409 = vadd.f32 0.0, %v408
        %v410 = vpop.f32.mrf.mxu0
        %411 = vmatprep.mubr.bf16.mxu0 0
        %412 = vmatmul.mubr.bf16.gmra.mxu0 %v337
        %v413 = vpop.f32.mrf.mxu0
        %v414 = vadd.f32 0.0, %v413
        %v415 = vpop.f32.mrf.mxu0
        %v416 = vpop.f32.mrf.mxu0
        %v417 = vadd.f32 0.0, %v416
        %v418 = vpop.f32.mrf.mxu0
        %419 = vdwg.mxu0
        %v420 = vpack.c.bf16 %v377, %v374
        %v421 = vpack.c.bf16 %v385, %v382
        %v422 = vpack.c.bf16 %v393, %v390
        %v423 = vpack.c.bf16 %v401, %v398
        %v424 = vpack.c.bf16 %v409, %v406
        %v425 = vpack.c.bf16 %v417, %v414
        %v426 = vld [vmem:[%s2] sm:$0xf]
        %v427 = vld [vmem:[%s2 + $0x4] sm:$0xf]
        %v428 = vld [vmem:[%s2 + $0x8] sm:$0xf]
        %v429 = vld [vmem:[%s2 + $0xc] sm:$0xf]
        %v430 = vld [vmem:[%s2 + $0x10] sm:$0xf]
        %v431 = vld [vmem:[%s2 + $0x14] sm:$0xf]
        %v434 = vunpack.c.l.b16 %v426
        %v435 = vunpack.c.l.b16 %v427
        %v436 = vpack.c.b16 %v435, %v434
        %v438 = vsel %vm320, %v436, 0
        %440 = vmatprep.subr.bf16.mxu0 0
        %441 = vmatpush1.bf16.msra.mxu0 0
        %442 = vmatprep.subr.bf16.mxu0 0
        %443 = vmatpush1.bf16.msra.mxu0 0
        %444 = vmatprep.subr.bf16.mxu0 0
        %445 = vmatpush1.bf16.msra.mxu0 0
        %446 = vmatprep.subr.bf16.mxu0 0
        %447 = vmatpush1.bf16.msra.mxu0 0
        %448 = vmatprep.subr.bf16.mxu0 0
        %449 = vmatpush1.bf16.msra.mxu0 0
        %450 = vmatprep.subr.bf16.mxu0 0
        %451 = vmatpush1.bf16.msra.mxu0 0
        %452 = vmatprep.subr.bf16.mxu0 0
        %453 = vmatpush1.bf16.msra.mxu0 %v421
        %454 = vmatprep.subr.bf16.mxu0 0
        %455 = vmatpush1.bf16.msra.mxu0 %v420
        %456 = vmatprep.subr.bf16.mxu0 0
        %457 = vmatpush2.bf16.msra.mxu0 0
        %458 = vmatprep.subr.bf16.mxu0 0
        %459 = vmatpush2.bf16.msra.mxu0 0
        %460 = vmatprep.subr.bf16.mxu0 0
        %461 = vmatpush2.bf16.msra.mxu0 0
        %462 = vmatprep.subr.bf16.mxu0 0
        %463 = vmatpush2.bf16.msra.mxu0 0
        %464 = vmatprep.subr.bf16.mxu0 0
        %465 = vmatpush2.bf16.msra.mxu0 0
        %466 = vmatprep.subr.bf16.mxu0 0
        %467 = vmatpush2.bf16.msra.mxu0 0
        %468 = vmatprep.subr.bf16.mxu0 0
        %469 = vmatpush2.bf16.msra.mxu0 0
        %470 = vmatprep.subr.bf16.mxu0 0
        %471 = vmatpush2.bf16.msra.mxu0 0
        %472 = vmatprep.mubr.bf16.mxu0 0
        %473 = vmatmul.mubr.bf16.gmra.mxu0 %v438
        %v474 = vpop.f32.mrf.mxu0
        %v475 = vadd.f32 0.0, %v474
        %v476 = vpop.f32.mrf.mxu0
        %v477 = vpop.f32.mrf.mxu0
        %v478 = vadd.f32 0.0, %v477
        %v479 = vpop.f32.mrf.mxu0
        %480 = vdwg.mxu0
        %v483 = vunpack.c.l.b16 %v428
        %v484 = vunpack.c.l.b16 %v429
        %v485 = vpack.c.b16 %v484, %v483
        %v487 = vsel %vm320, %v485, 0
        %489 = vmatprep.subr.bf16.mxu0 0
        %490 = vmatpush1.bf16.msra.mxu0 0
        %491 = vmatprep.subr.bf16.mxu0 0
        %492 = vmatpush1.bf16.msra.mxu0 0
        %493 = vmatprep.subr.bf16.mxu0 0
        %494 = vmatpush1.bf16.msra.mxu0 0
        %495 = vmatprep.subr.bf16.mxu0 0
        %496 = vmatpush1.bf16.msra.mxu0 0
        %497 = vmatprep.subr.bf16.mxu0 0
        %498 = vmatpush1.bf16.msra.mxu0 0
        %499 = vmatprep.subr.bf16.mxu0 0
        %500 = vmatpush1.bf16.msra.mxu0 0
        %501 = vmatprep.subr.bf16.mxu0 0
        %502 = vmatpush1.bf16.msra.mxu0 %v423
        %503 = vmatprep.subr.bf16.mxu0 0
        %504 = vmatpush1.bf16.msra.mxu0 %v422
        %505 = vmatprep.subr.bf16.mxu0 0
        %506 = vmatpush2.bf16.msra.mxu0 0
        %507 = vmatprep.subr.bf16.mxu0 0
        %508 = vmatpush2.bf16.msra.mxu0 0
        %509 = vmatprep.subr.bf16.mxu0 0
        %510 = vmatpush2.bf16.msra.mxu0 0
        %511 = vmatprep.subr.bf16.mxu0 0
        %512 = vmatpush2.bf16.msra.mxu0 0
        %513 = vmatprep.subr.bf16.mxu0 0
        %514 = vmatpush2.bf16.msra.mxu0 0
        %515 = vmatprep.subr.bf16.mxu0 0
        %516 = vmatpush2.bf16.msra.mxu0 0
        %517 = vmatprep.subr.bf16.mxu0 0
        %518 = vmatpush2.bf16.msra.mxu0 0
        %519 = vmatprep.subr.bf16.mxu0 0
        %520 = vmatpush2.bf16.msra.mxu0 0
        %521 = vmatprep.mubr.bf16.mxu0 0
        %522 = vmatmul.mubr.bf16.gmra.mxu0 %v487
        %v523 = vpop.f32.mrf.mxu0
        %v524 = vadd.f32 0.0, %v523
        %v525 = vpop.f32.mrf.mxu0
        %v526 = vpop.f32.mrf.mxu0
        %v527 = vadd.f32 0.0, %v526
        %v528 = vpop.f32.mrf.mxu0
        %529 = vdwg.mxu0
        %v532 = vunpack.c.l.b16 %v430
        %v533 = vunpack.c.l.b16 %v431
        %v534 = vpack.c.b16 %v533, %v532
        %v536 = vsel %vm320, %v534, 0
        %538 = vmatprep.subr.bf16.mxu0 0
        %539 = vmatpush1.bf16.msra.mxu0 0
        %540 = vmatprep.subr.bf16.mxu0 0
        %541 = vmatpush1.bf16.msra.mxu0 0
        %542 = vmatprep.subr.bf16.mxu0 0
        %543 = vmatpush1.bf16.msra.mxu0 0
        %544 = vmatprep.subr.bf16.mxu0 0
        %545 = vmatpush1.bf16.msra.mxu0 0
        %546 = vmatprep.subr.bf16.mxu0 0
        %547 = vmatpush1.bf16.msra.mxu0 0
        %548 = vmatprep.subr.bf16.mxu0 0
        %549 = vmatpush1.bf16.msra.mxu0 0
        %550 = vmatprep.subr.bf16.mxu0 0
        %551 = vmatpush1.bf16.msra.mxu0 %v425
        %552 = vmatprep.subr.bf16.mxu0 0
        %553 = vmatpush1.bf16.msra.mxu0 %v424
        %554 = vmatprep.subr.bf16.mxu0 0
        %555 = vmatpush2.bf16.msra.mxu0 0
        %556 = vmatprep.subr.bf16.mxu0 0
        %557 = vmatpush2.bf16.msra.mxu0 0
        %558 = vmatprep.subr.bf16.mxu0 0
        %559 = vmatpush2.bf16.msra.mxu0 0
        %560 = vmatprep.subr.bf16.mxu0 0
        %561 = vmatpush2.bf16.msra.mxu0 0
        %562 = vmatprep.subr.bf16.mxu0 0
        %563 = vmatpush2.bf16.msra.mxu0 0
        %564 = vmatprep.subr.bf16.mxu0 0
        %565 = vmatpush2.bf16.msra.mxu0 0
        %566 = vmatprep.subr.bf16.mxu0 0
        %567 = vmatpush2.bf16.msra.mxu0 0
        %568 = vmatprep.subr.bf16.mxu0 0
        %569 = vmatpush2.bf16.msra.mxu0 0
        %570 = vmatprep.mubr.bf16.mxu0 0
        %571 = vmatmul.mubr.bf16.gmra.mxu0 %v536
        %v572 = vpop.f32.mrf.mxu0
        %v573 = vadd.f32 0.0, %v572
        %v574 = vpop.f32.mrf.mxu0
        %v575 = vpop.f32.mrf.mxu0
        %v576 = vadd.f32 0.0, %v575
        %v577 = vpop.f32.mrf.mxu0
        %578 = vdwg.mxu0
        %v579 = vld [vmem:[%s228] sm:$0x1]
        %v580 = vld [vmem:[%s228 + $0x1] sm:$0x1]
        %v581 = vld [vmem:[%s228 + $0x2] sm:$0x1]
        %v582 = vld [vmem:[%s228 + $0x3] sm:$0x1]
        %v583 = vld [vmem:[%s228 + $0x4] sm:$0x1]
        %v584 = vld [vmem:[%s228 + $0x5] sm:$0x1]
        %v588 = vlaneseq
        %v589 = vshrl.u32 %v588, 7
        %v590 = vsub.s32 0, %v589
        %v591 = vrot.slane %v579, %v590
        %v592 = vlaneseq
        %v593 = vshrl.u32 %v592, 7
        %v594 = vsub.s32 0, %v593
        %v595 = vrot.slane %v581, %v594
        %v596 = vlaneseq
        %v597 = vshrl.u32 %v596, 7
        %v598 = vsub.s32 0, %v597
        %v599 = vrot.slane %v583, %v598
        %v603 = vmul.f32 %v475, %v591
        %v604 = vmul.f32 %v478, %v591
        %v605 = vmul.f32 %v524, %v595
        %v606 = vmul.f32 %v527, %v595
        %v607 = vmul.f32 %v573, %v599
        %v608 = vmul.f32 %v576, %v599
        %v612 = vlaneseq
        %v613 = vshrl.u32 %v612, 7
        %v614 = vsub.s32 0, %v613
        %v615 = vrot.slane %v580, %v614
        %v616 = vlaneseq
        %v617 = vshrl.u32 %v616, 7
        %v618 = vsub.s32 0, %v617
        %v619 = vrot.slane %v582, %v618
        %v620 = vlaneseq
        %v621 = vshrl.u32 %v620, 7
        %v622 = vsub.s32 0, %v621
        %v623 = vrot.slane %v584, %v622
        %v627 = vadd.f32 %v603, %v615
        %v628 = vadd.f32 %v604, %v615
        %v629 = vadd.f32 %v605, %v619
        %v630 = vadd.f32 %v606, %v619
        %v631 = vadd.f32 %v607, %v623
        %v632 = vadd.f32 %v608, %v623
        %vm633 = vcmask 130048
        %634 = vst.msk [vmem:[%s257] sm:$0xff] %vm633, %v627
        %635 = vst.msk [vmem:[%s257 + $0x8] sm:$0xff] %vm633, %v628
        %636 = vst.msk [vmem:[%s257 + $0x10] sm:$0xff] %vm633, %v629
        %637 = vst.msk [vmem:[%s257 + $0x18] sm:$0xff] %vm633, %v630
        %638 = vst.msk [vmem:[%s257 + $0x20] sm:$0xff] %vm633, %v631
        %639 = vst.msk [vmem:[%s257 + $0x28] sm:$0xff] %vm633, %v632
        %s640 = sand.u32 %s126, 1
        %s641 = scalar_lea.sflag [#allocation4], %s640
        %s642 = sand.u32 %s126, 1
        %s643 = smul.addr %s642, 48
        %s644 = scalar_lea.vmem [#allocation7], %s643
        // Predicated region
        $region45: #{tpu_custom_call.1} parent=35 // pred_check
          %p645 = pneg %p136
        $region46: #{tpu_custom_call.1} parent=35 // pred_check_branch
          %647 = sbr.rel (%p645) target = $region48
        $region47: #{tpu_custom_call.1} parent=35 // pred_region
          %s648 = smul.u32 3, %s24
          %s650 = ssub.s32 768, 768
          %651 = vsyncadd %s641, %s650
          %s652 = smul.addr %s648, 2
          %s653 = smul.addr %s652, 128
          %s654 = scalar_lea.hbm %s4, %s653
          %s655 = sshll.u32 %s644, 4
          %s656 = int_to_ptr.vmem [resolvable:$true] %s655
          %661 = dma.vmem_to_hbm [thread:$0]  %s656, 768, %s654, %s641, 128, 128, 8
        $region48: #{tpu_custom_call.1} parent=35 // pred_fallthru
          _
      $region36: #{tpu_custom_call.1} parent=5 // pred_fallthru
        _
      %p662 = scmp.le.s32.totalorder 2, %s19
      // Predicated region
      $region49: #{tpu_custom_call.1} parent=5 // pred_check
        %p663 = pneg %p662
      $region50: #{tpu_custom_call.1} parent=5 // pred_check_branch
        %665 = sbr.rel (%p663) target = $region52
      $region51: #{tpu_custom_call.1} parent=5 // pred_region
        %s666 = ssub.s32 %s19, 2
        // Predicated region
        $region53: #{tpu_custom_call.1} parent=51 // pred_check
          %p667 = pneg %p142
        $region54: #{tpu_custom_call.1} parent=51 // pred_check_branch
          %669 = sbr.rel (%p667) target = $region56
        $region55: #{tpu_custom_call.1} parent=51 // pred_region
          %s670 = sand.u32 %s127, 1
          %s671 = scalar_lea.sflag [#allocation4], %s670
          %s672 = sand.u32 %s127, 1
          %s673 = smul.addr %s672, 48
          %s674 = scalar_lea.vmem [#allocation7], %s673
          %675 = dma.done %s671, 768
        $region56: #{tpu_custom_call.1} parent=51 // pred_fallthru
          _
      $region52: #{tpu_custom_call.1} parent=5 // pred_fallthru
        _
    $region6: #{tpu_custom_call.1} parent=1 // loop_footer
      %s23 = sadd.s32 1, %s19
    $region7: #{tpu_custom_call.1} parent=1 // loop_footer_branch
      %18 = sbr.rel target = $region3
    $region8: #{tpu_custom_call.1} parent=1 // loop_exit
      _
    %676 = vsyncpa [#allocation3], 1
    %s677 = scalar_lea.sflag [#allocation3], 1
    %678 = vsyncpa %s677, 1
    %679 = vsyncpa [#allocation6], 1
    %s680 = scalar_lea.sflag [#allocation6], 1
    %681 = vsyncpa %s680, 1
    %682 = vsyncpa [#allocation4], 1
    %s683 = scalar_lea.sflag [#allocation4], 1
    %684 = vsyncpa %s683, 1

// kernel: tpu_custom_call.1
$region0: #{tpu_custom_call.1}
  #allocation0 [shape = 'u32[]', space=smem, size = 0x4, offset = 0x4, fixed_abs, tag = 'smem constant byte address 0x4 - core index']
  #allocation1 [shape = 'u32[144,128]{1,0:T(1,128)}', space=vmem, size = 0x12000, scoped, tag = 'internal scratch']
  %s0 = inlined_call_operand.hbm [shape: bf16[6,32,32], index: 0, kind: input, shape index: {}]
  %s1 = inlined_call_operand.vmem [shape: bf16[32,16], index: 1, kind: input, shape index: {}]
  %s2 = inlined_call_operand.vmem [shape: bf16[3,16,32], index: 2, kind: input, shape index: {}]
  %s3 = inlined_call_operand.hbm [shape: f32[6,2,1,16], index: 3, kind: input, shape index: {}]
  %s4 = inlined_call_operand.hbm [shape: f32[6,16,16], index: 4, kind: output, shape index: {}]
  %s5 = sld [smem:[#allocation0]]
  $region57: #{tpu_custom_call.1} parent=0
    _
  %s7 = ssub.s32 1, %s5
  %s8 = scalar_select 0, %s7, %s5
  $region1: #{tpu_custom_call.1} parent=0
    #allocation2 [shape = 'u8[49152]{0}', space=vmem, size = 0xc000, scoped, tag = 'input window, operand 0']
    #allocation3 [shape = 's32[2]{0}', space=sflag, size = 0x8, scoped, tag = 'scoped memory for tpu_custom_call.1']
    #allocation4 [shape = 's32[2]{0}', space=sflag, size = 0x8, scoped, tag = 'scoped memory for tpu_custom_call.1']
    #allocation5 [shape = 'u8[6144]{0}', space=vmem, size = 0x1800, scoped, tag = 'input window, operand 3']
    #allocation6 [shape = 's32[2]{0}', space=sflag, size = 0x8, scoped, tag = 'scoped memory for tpu_custom_call.1']
    #allocation7 [shape = 'u8[49152]{0}', space=vmem, size = 0xc000, scoped, tag = 'output window, operand 0']
    %9 = vsyncpa [#allocation3], 0
    %s10 = scalar_lea.sflag [#allocation3], 1
    %11 = vsyncpa %s10, 0
    %12 = vsyncpa [#allocation6], 0
    %s13 = scalar_lea.sflag [#allocation6], 1
    %14 = vsyncpa %s13, 0
    %15 = vsyncpa [#allocation4], 0
    %s16 = scalar_lea.sflag [#allocation4], 1
    %17 = vsyncpa %s16, 0
    loop: start=0, step=1, limit=4
    $region2: #{tpu_custom_call.1} parent=1 // loop_pre_header
      _
    $region3: #{tpu_custom_call.1} parent=1 // loop_header
      %s19 = sphi 0, %s23
      %p20 = scmp.ge.s32.totalorder %s19, 4
      %s29 = sphi 0, %s31
      %s32 = sphi 0, %s29
      %s33 = sphi 0, %s32
      %s49 = sphi 0, %s33
      %s53 = sphi 0, %s53
      %s55 = sphi 0, %s53
      %s56 = sphi 0, %s55
      %s70 = sphi 0, %s56
      %s74 = sphi 0, %s74
      %s76 = sphi 0, %s74
      %s77 = sphi 0, %s76
      %s91 = sphi 0, %s77
      %s97 = sphi 0, %s99
      %s100 = sphi 0, %s97
      %s101 = sphi 0, %s100
      %s117 = sphi 0, %s101
      %s123 = sphi 0, %s125
      %s126 = sphi 0, %s123
      %s127 = sphi 0, %s126
      %s143 = sphi 0, %s127
    $region4: #{tpu_custom_call.1} parent=1 // loop_header_branch
      %22 = sbr.rel (%p20) target = $region8
    $region5: #{tpu_custom_call.1} parent=1 // loop_body
      %s24 = ssub.s32 %s19, 1
      %s25 = ssub.s32 %s19, 2
      %s26 = sadd.s32 %s19, 1
      %s27 = ssub.s32 %s19, %s26
      %p28 = scmp.eq.s32.totalorder %s27, 0
      %s30 = sadd.s32 %s29, 1
      %s31 = scalar_select %p28, %s29, %s30
      %p34 = pneg %p28
      %p35 = scmp.eq.s32.totalorder %s19, 1
      %p36 = por %p34, %p35
      %p37 = scmp.ne.s32.totalorder %s29, %s32
      %p38 = scmp.eq.s32.totalorder %s19, 0
      %p39 = por %p37, %p38
      %p40 = scmp.ne.s32.totalorder %s29, %s32
      %p41 = scmp.eq.s32.totalorder %s24, 1
      %p42 = por %p40, %p41
      %p43 = scmp.ne.s32.totalorder %s32, %s33
      %p44 = scmp.eq.s32.totalorder %s24, 0
      %p45 = por %p43, %p44
      %p46 = scmp.ne.s32.totalorder %s32, %s33
      %p47 = scmp.eq.s32.totalorder %s25, 1
      %p48 = por %p46, %p47
      %p50 = scmp.ne.s32.totalorder %s33, %s49
      %p51 = scmp.eq.s32.totalorder %s25, 0
      %p52 = por %p50, %p51
      %s54 = sadd.s32 %s53, 1
      %p57 = scmp.eq.s32.totalorder %s19, 1
      %p58 = scmp.ne.s32.totalorder %s53, %s55
      %p59 = scmp.eq.s32.totalorder %s19, 0
      %p60 = por %p58, %p59
      %p61 = scmp.ne.s32.totalorder %s53, %s55
      %p62 = scmp.eq.s32.totalorder %s24, 1
      %p63 = por %p61, %p62
      %p64 = scmp.ne.s32.totalorder %s55, %s56
      %p65 = scmp.eq.s32.totalorder %s24, 0
      %p66 = por %p64, %p65
      %p67 = scmp.ne.s32.totalorder %s55, %s56
      %p68 = scmp.eq.s32.totalorder %s25, 1
      %p69 = por %p67, %p68
      %p71 = scmp.ne.s32.totalorder %s56, %s70
      %p72 = scmp.eq.s32.totalorder %s25, 0
      %p73 = por %p71, %p72
      %s75 = sadd.s32 %s74, 1
      %p78 = scmp.eq.s32.totalorder %s19, 1
      %p79 = scmp.ne.s32.totalorder %s74, %s76
      %p80 = scmp.eq.s32.totalorder %s19, 0
      %p81 = por %p79, %p80
      %p82 = scmp.ne.s32.totalorder %s74, %s76
      %p83 = scmp.eq.s32.totalorder %s24, 1
      %p84 = por %p82, %p83
      %p85 = scmp.ne.s32.totalorder %s76, %s77
      %p86 = scmp.eq.s32.totalorder %s24, 0
      %p87 = por %p85, %p86
      %p88 = scmp.ne.s32.totalorder %s76, %s77
      %p89 = scmp.eq.s32.totalorder %s25, 1
      %p90 = por %p88, %p89
      %p92 = scmp.ne.s32.totalorder %s77, %s91
      %p93 = scmp.eq.s32.totalorder %s25, 0
      %p94 = por %p92, %p93
      %s95 = ssub.s32 %s19, %s26
      %p96 = scmp.eq.s32.totalorder %s95, 0
      %s98 = sadd.s32 %s97, 1
      %s99 = scalar_select %p96, %s97, %s98
      %p102 = pneg %p96
      %p103 = scmp.eq.s32.totalorder %s19, 1
      %p104 = por %p102, %p103
      %p105 = scmp.ne.s32.totalorder %s97, %s100
      %p106 = scmp.eq.s32.totalorder %s19, 0
      %p107 = por %p105, %p106
      %p108 = scmp.ne.s32.totalorder %s97, %s100
      %p109 = scmp.eq.s32.totalorder %s24, 1
      %p110 = por %p108, %p109
      %p111 = scmp.ne.s32.totalorder %s100, %s101
      %p112 = scmp.eq.s32.totalorder %s24, 0
      %p113 = por %p111, %p112
      %p114 = scmp.ne.s32.totalorder %s100, %s101
      %p115 = scmp.eq.s32.totalorder %s25, 1
      %p116 = por %p114, %p115
      %p118 = scmp.ne.s32.totalorder %s101, %s117
      %p119 = scmp.eq.s32.totalorder %s25, 0
      %p120 = por %p118, %p119
      %s121 = ssub.s32 %s19, %s26
      %p122 = scmp.eq.s32.totalorder %s121, 0
      %s124 = sadd.s32 %s123, 1
      %s125 = scalar_select %p122, %s123, %s124
      %p128 = pneg %p122
      %p129 = scmp.eq.s32.totalorder %s19, 1
      %p130 = por %p128, %p129
      %p131 = scmp.ne.s32.totalorder %s123, %s126
      %p132 = scmp.eq.s32.totalorder %s19, 0
      %p133 = por %p131, %p132
      %p134 = scmp.ne.s32.totalorder %s123, %s126
      %p135 = scmp.eq.s32.totalorder %s24, 1
      %p136 = por %p134, %p135
      %p137 = scmp.ne.s32.totalorder %s126, %s127
      %p138 = scmp.eq.s32.totalorder %s24, 0
      %p139 = por %p137, %p138
      %p140 = scmp.ne.s32.totalorder %s126, %s127
      %p141 = scmp.eq.s32.totalorder %s25, 1
      %p142 = por %p140, %p141
      %p144 = scmp.ne.s32.totalorder %s127, %s143
      %p145 = scmp.eq.s32.totalorder %s25, 0
      %p146 = por %p144, %p145
      %p147 = scmp.le.s32.totalorder 1, %s19
      %p148 = scmp.lt.s32.totalorder %s19, 3
      %p149 = pnand %p147, %p148
      %p150 = pneg %p149
      // Predicated region
      $region9: #{tpu_custom_call.1} parent=5 // pred_check
        _
      $region10: #{tpu_custom_call.1} parent=5 // pred_check_branch
        %152 = sbr.rel (%p149) target = $region12
      $region11: #{tpu_custom_call.1} parent=5 // pred_region
        %s153 = ssub.s32 %s19, 1
        // Predicated region
        $region13: #{tpu_custom_call.1} parent=11 // pred_check
          %p154 = pneg %p66
        $region14: #{tpu_custom_call.1} parent=11 // pred_check_branch
          %156 = sbr.rel (%p154) target = $region16
        $region15: #{tpu_custom_call.1} parent=11 // pred_region
          _
        $region16: #{tpu_custom_call.1} parent=11 // pred_fallthru
          _
        // Predicated region
        $region17: #{tpu_custom_call.1} parent=11 // pred_check
          %p157 = pneg %p87
        $region18: #{tpu_custom_call.1} parent=11 // pred_check_branch
          %159 = sbr.rel (%p157) target = $region20
        $region19: #{tpu_custom_call.1} parent=11 // pred_region
          _
        $region20: #{tpu_custom_call.1} parent=11 // pred_fallthru
          _
      $region12: #{tpu_custom_call.1} parent=5 // pred_fallthru
        _
      %p160 = scmp.lt.s32.totalorder %s19, 2
      // Predicated region
      $region21: #{tpu_custom_call.1} parent=5 // pred_check
        %p161 = pneg %p160
      $region22: #{tpu_custom_call.1} parent=5 // pred_check_branch
        %163 = sbr.rel (%p161) target = $region24
      $region23: #{tpu_custom_call.1} parent=5 // pred_region
        // Predicated region
        $region25: #{tpu_custom_call.1} parent=23 // pred_check
          %p164 = pneg %p39
        $region26: #{tpu_custom_call.1} parent=23 // pred_check_branch
          %166 = sbr.rel (%p164) target = $region28
        $region27: #{tpu_custom_call.1} parent=23 // pred_region
          %s167 = sand.u32 %s29, 1
          %s168 = scalar_lea.sflag [#allocation3], %s167
          %s169 = sand.u32 %s29, 1
          %s170 = smul.addr %s169, 48
          %s171 = scalar_lea.vmem [#allocation2], %s170
          %s172 = smul.u32 3, %s19
          %s174 = ssub.s32 768, 768
          %175 = vsyncadd %s168, %s174
          %s176 = smul.addr %s172, 4
          %s177 = smul.addr %s176, 64
          %s178 = scalar_lea.hbm %s0, %s177
          %s179 = sshll.u32 %s171, 4
          %s180 = int_to_ptr.vmem [resolvable:$true] %s179
          %185 = dma.hbm_to_vmem [thread:$0]  %s178, 768, %s180, %s168, 64, 64, 4
        $region28: #{tpu_custom_call.1} parent=23 // pred_fallthru
          _
        // Predicated region
        $region29: #{tpu_custom_call.1} parent=23 // pred_check
          %p186 = pneg %p107
        $region30: #{tpu_custom_call.1} parent=23 // pred_check_branch
          %188 = sbr.rel (%p186) target = $region32
        $region31: #{tpu_custom_call.1} parent=23 // pred_region
          %s189 = sand.u32 %s97, 1
          %s190 = scalar_lea.sflag [#allocation6], %s189
          %s191 = sand.u32 %s97, 1
          %s192 = smul.addr %s191, 6
          %s193 = scalar_lea.vmem [#allocation5], %s192
          %s194 = smul.u32 3, %s19
          %s196 = ssub.s32 96, 96
          %197 = vsyncadd %s190, %s196
          %s198 = smul.addr %s194, 2
          %s199 = smul.addr %s198, 16
          %s200 = scalar_lea.hbm %s3, %s199
          %s201 = sshll.u32 %s193, 4
          %s202 = int_to_ptr.vmem [resolvable:$true] %s201
          %207 = dma.hbm_to_vmem [thread:$0]  %s200, 96, %s202, %s190, 16, 16, 1
        $region32: #{tpu_custom_call.1} parent=23 // pred_fallthru
          _
      $region24: #{tpu_custom_call.1} parent=5 // pred_fallthru
        _
      %p208 = scmp.le.s32.totalorder 1, %s19
      %p209 = scmp.lt.s32.totalorder %s19, 3
      %p210 = pnand %p208, %p209
      %p211 = pneg %p210
      // Predicated region
      $region33: #{tpu_custom_call.1} parent=5 // pred_check
        _
      $region34: #{tpu_custom_call.1} parent=5 // pred_check_branch
        %213 = sbr.rel (%p210) target = $region36
      $region35: #{tpu_custom_call.1} parent=5 // pred_region
        %s214 = ssub.s32 %s19, 1
        %s215 = sand.u32 %s32, 1
        %s216 = scalar_lea.sflag [#allocation3], %s215
        %s217 = sand.u32 %s32, 1
        %s218 = smul.addr %s217, 48
        %s219 = scalar_lea.vmem [#allocation2], %s218
        // Predicated region
        $region37: #{tpu_custom_call.1} parent=35 // pred_check
          %p220 = pneg %p45
        $region38: #{tpu_custom_call.1} parent=35 // pred_check_branch
          %222 = sbr.rel (%p220) target = $region40
        $region39: #{tpu_custom_call.1} parent=35 // pred_region
          %223 = dma.done %s216, 768
        $region40: #{tpu_custom_call.1} parent=35 // pred_fallthru
          _
        %s224 = sand.u32 %s100, 1
        %s225 = scalar_lea.sflag [#allocation6], %s224
        %s226 = sand.u32 %s100, 1
        %s227 = smul.addr %s226, 6
        %s228 = scalar_lea.vmem [#allocation5], %s227
        // Predicated region
        $region41: #{tpu_custom_call.1} parent=35 // pred_check
          %p229 = pneg %p113
        $region42: #{tpu_custom_call.1} parent=35 // pred_check_branch
          %231 = sbr.rel (%p229) target = $region44
        $region43: #{tpu_custom_call.1} parent=35 // pred_region
          %232 = dma.done %s225, 96
        $region44: #{tpu_custom_call.1} parent=35 // pred_fallthru
          _
        %s233 = sand.u32 %s32, 1
        %s234 = scalar_lea.sflag [#allocation3], %s233
        %s235 = sand.u32 %s32, 1
        %s236 = smul.addr %s235, 48
        %s237 = scalar_lea.vmem [#allocation2], %s236
        %p238 = pneg %p45
        %p239 = pneg %p42
        %p240 = pneg %p66
        %p241 = pneg %p63
        %p242 = pneg %p87
        %p243 = pneg %p84
        %s244 = sand.u32 %s100, 1
        %s245 = scalar_lea.sflag [#allocation6], %s244
        %s246 = sand.u32 %s100, 1
        %s247 = smul.addr %s246, 6
        %s248 = scalar_lea.vmem [#allocation5], %s247
        %p249 = pneg %p113
        %p250 = pneg %p110
        %p251 = pneg %p139
        %p252 = pneg %p136
        %s253 = sand.u32 %s126, 1
        %s254 = scalar_lea.sflag [#allocation4], %s253
        %s255 = sand.u32 %s126, 1
        %s256 = smul.addr %s255, 48
        %s257 = scalar_lea.vmem [#allocation7], %s256
        %s258 = smul.u32 3, %s24
        %s259 = smul.u32 3, %s24
        %s260 = smul.u32 3, %s24
        %v262 = vld [vmem:[%s219] sm:$0xf]
        %v263 = vld [vmem:[%s219 + $0x4] sm:$0xf]
        %v264 = vld [vmem:[%s219 + $0x8] sm:$0xf]
        %v265 = vld [vmem:[%s219 + $0xc] sm:$0xf]
        %v266 = vld [vmem:[%s219 + $0x10] sm:$0xf]
        %v267 = vld [vmem:[%s219 + $0x14] sm:$0xf]
        %v268 = vld [vmem:[%s219 + $0x18] sm:$0xf]
        %v269 = vld [vmem:[%s219 + $0x1c] sm:$0xf]
        %v270 = vld [vmem:[%s219 + $0x20] sm:$0xf]
        %v271 = vld [vmem:[%s219 + $0x24] sm:$0xf]
        %v272 = vld [vmem:[%s219 + $0x28] sm:$0xf]
        %v273 = vld [vmem:[%s219 + $0x2c] sm:$0xf]
        %v274 = vld [vmem:[%s1] sm:$0xf]
        %v275 = vld [vmem:[%s1 + $0x4] sm:$0xf]
        %v276 = vld [vmem:[%s1 + $0x8] sm:$0xf]
        %v277 = vld [vmem:[%s1 + $0xc] sm:$0xf]
        %v290 = vunpack.c.l.b16 %v262
        %v291 = vunpack.c.l.b16 %v263
        %v292 = vunpack.c.l.b16 %v264
        %v293 = vunpack.c.l.b16 %v265
        %v294 = vunpack.c.l.b16 %v266
        %v295 = vunpack.c.l.b16 %v267
        %v296 = vunpack.c.l.b16 %v268
        %v297 = vunpack.c.l.b16 %v269
        %v298 = vunpack.c.l.b16 %v270
        %v299 = vunpack.c.l.b16 %v271
        %v300 = vunpack.c.l.b16 %v272
        %v301 = vunpack.c.l.b16 %v273
        %v302 = vpack.c.b16 %v291, %v290
        %v303 = vpack.c.b16 %v293, %v292
        %v304 = vpack.c.b16 %v295, %v294
        %v305 = vpack.c.b16 %v297, %v296
        %v306 = vpack.c.b16 %v299, %v298
        %v307 = vpack.c.b16 %v301, %v300
        %v312 = vunpack.c.l.b16 %v274
        %v313 = vunpack.c.l.b16 %v275
        %v314 = vunpack.c.l.b16 %v276
        %v315 = vunpack.c.l.b16 %v277
        %v316 = vpack.c.b16 %v313, %v312
        %v317 = vpack.c.b16 %v315, %v314
        %vm320 = vcmask 261120
        %v322 = vsel %vm320, %v302, 0
        %v325 = vsel %vm320, %v303, 0
        %v328 = vsel %vm320, %v304, 0
        %v331 = vsel %vm320, %v305, 0
        %v334 = vsel %vm320, %v306, 0
        %v337 = vsel %vm320, %v307, 0
        %339 = vmatprep.subr.bf16.mxu0 0
        %340 = vmatpush1.bf16.msra.mxu0 0
        %341 = vmatprep.subr.bf16.mxu0 0
        %342 = vmatpush1.bf16.msra.mxu0 0
        %343 = vmatprep.subr.bf16.mxu0 0
        %344 = vmatpush1.bf16.msra.mxu0 0
        %345 = vmatprep.subr.bf16.mxu0 0
        %346 = vmatpush1.bf16.msra.mxu0 0
        %347 = vmatprep.subr.bf16.mxu0 0
        %348 = vmatpush1.bf16.msra.mxu0 0
        %349 = vmatprep.subr.bf16.mxu0 0
        %350 = vmatpush1.bf16.msra.mxu0 0
        %351 = vmatprep.subr.bf16.mxu0 0
        %352 = vmatpush1.bf16.msra.mxu0 %v317
        %353 = vmatprep.subr.bf16.mxu0 0
        %354 = vmatpush1.bf16.msra.mxu0 %v316
        %355 = vmatprep.subr.bf16.mxu0 0
        %356 = vmatpush2.bf16.msra.mxu0 0
        %357 = vmatprep.subr.bf16.mxu0 0
        %358 = vmatpush2.bf16.msra.mxu0 0
        %359 = vmatprep.subr.bf16.mxu0 0
        %360 = vmatpush2.bf16.msra.mxu0 0
        %361 = vmatprep.subr.bf16.mxu0 0
        %362 = vmatpush2.bf16.msra.mxu0 0
        %363 = vmatprep.subr.bf16.mxu0 0
        %364 = vmatpush2.bf16.msra.mxu0 0
        %365 = vmatprep.subr.bf16.mxu0 0
        %366 = vmatpush2.bf16.msra.mxu0 0
        %367 = vmatprep.subr.bf16.mxu0 0
        %368 = vmatpush2.bf16.msra.mxu0 0
        %369 = vmatprep.subr.bf16.mxu0 0
        %370 = vmatpush2.bf16.msra.mxu0 0
        %371 = vmatprep.mubr.bf16.mxu0 0
        %372 = vmatmul.mubr.bf16.gmra.mxu0 %v322
        %v373 = vpop.f32.mrf.mxu0
        %v374 = vadd.f32 0.0, %v373
        %v375 = vpop.f32.mrf.mxu0
        %v376 = vpop.f32.mrf.mxu0
        %v377 = vadd.f32 0.0, %v376
        %v378 = vpop.f32.mrf.mxu0
        %379 = vmatprep.mubr.bf16.mxu0 0
        %380 = vmatmul.mubr.bf16.gmra.mxu0 %v325
        %v381 = vpop.f32.mrf.mxu0
        %v382 = vadd.f32 0.0, %v381
        %v383 = vpop.f32.mrf.mxu0
        %v384 = vpop.f32.mrf.mxu0
        %v385 = vadd.f32 0.0, %v384
        %v386 = vpop.f32.mrf.mxu0
        %387 = vmatprep.mubr.bf16.mxu0 0
        %388 = vmatmul.mubr.bf16.gmra.mxu0 %v328
        %v389 = vpop.f32.mrf.mxu0
        %v390 = vadd.f32 0.0, %v389
        %v391 = vpop.f32.mrf.mxu0
        %v392 = vpop.f32.mrf.mxu0
        %v393 = vadd.f32 0.0, %v392
        %v394 = vpop.f32.mrf.mxu0
        %395 = vmatprep.mubr.bf16.mxu0 0
        %396 = vmatmul.mubr.bf16.gmra.mxu0 %v331
        %v397 = vpop.f32.mrf.mxu0
        %v398 = vadd.f32 0.0, %v397
        %v399 = vpop.f32.mrf.mxu0
        %v400 = vpop.f32.mrf.mxu0
        %v401 = vadd.f32 0.0, %v400
        %v402 = vpop.f32.mrf.mxu0
        %403 = vmatprep.mubr.bf16.mxu0 0
        %404 = vmatmul.mubr.bf16.gmra.mxu0 %v334
        %v405 = vpop.f32.mrf.mxu0
        %v406 = vadd.f32 0.0, %v405
        %v407 = vpop.f32.mrf.mxu0
        %v408 = vpop.f32.mrf.mxu0
        %v409 = vadd.f32 0.0, %v408
        %v410 = vpop.f32.mrf.mxu0
        %411 = vmatprep.mubr.bf16.mxu0 0
        %412 = vmatmul.mubr.bf16.gmra.mxu0 %v337
        %v413 = vpop.f32.mrf.mxu0
        %v414 = vadd.f32 0.0, %v413
        %v415 = vpop.f32.mrf.mxu0
        %v416 = vpop.f32.mrf.mxu0
        %v417 = vadd.f32 0.0, %v416
        %v418 = vpop.f32.mrf.mxu0
        %419 = vdwg.mxu0
        %v420 = vpack.c.bf16 %v377, %v374
        %v421 = vpack.c.bf16 %v385, %v382
        %v422 = vpack.c.bf16 %v393, %v390
        %v423 = vpack.c.bf16 %v401, %v398
        %v424 = vpack.c.bf16 %v409, %v406
        %v425 = vpack.c.bf16 %v417, %v414
        %v426 = vld [vmem:[%s2] sm:$0xf]
        %v427 = vld [vmem:[%s2 + $0x4] sm:$0xf]
        %v428 = vld [vmem:[%s2 + $0x8] sm:$0xf]
        %v429 = vld [vmem:[%s2 + $0xc] sm:$0xf]
        %v430 = vld [vmem:[%s2 + $0x10] sm:$0xf]
        %v431 = vld [vmem:[%s2 + $0x14] sm:$0xf]
        %v434 = vunpack.c.l.b16 %v426
        %v435 = vunpack.c.l.b16 %v427
        %v436 = vpack.c.b16 %v435, %v434
        %v438 = vsel %vm320, %v436, 0
        %440 = vmatprep.subr.bf16.mxu0 0
        %441 = vmatpush1.bf16.msra.mxu0 0
        %442 = vmatprep.subr.bf16.mxu0 0
        %443 = vmatpush1.bf16.msra.mxu0 0
        %444 = vmatprep.subr.bf16.mxu0 0
        %445 = vmatpush1.bf16.msra.mxu0 0
        %446 = vmatprep.subr.bf16.mxu0 0
        %447 = vmatpush1.bf16.msra.mxu0 0
        %448 = vmatprep.subr.bf16.mxu0 0
        %449 = vmatpush1.bf16.msra.mxu0 0
        %450 = vmatprep.subr.bf16.mxu0 0
        %451 = vmatpush1.bf16.msra.mxu0 0
        %452 = vmatprep.subr.bf16.mxu0 0
        %453 = vmatpush1.bf16.msra.mxu0 %v421
        %454 = vmatprep.subr.bf16.mxu0 0
        %455 = vmatpush1.bf16.msra.mxu0 %v420
        %456 = vmatprep.subr.bf16.mxu0 0
        %457 = vmatpush2.bf16.msra.mxu0 0
        %458 = vmatprep.subr.bf16.mxu0 0
        %459 = vmatpush2.bf16.msra.mxu0 0
        %460 = vmatprep.subr.bf16.mxu0 0
        %461 = vmatpush2.bf16.msra.mxu0 0
        %462 = vmatprep.subr.bf16.mxu0 0
        %463 = vmatpush2.bf16.msra.mxu0 0
        %464 = vmatprep.subr.bf16.mxu0 0
        %465 = vmatpush2.bf16.msra.mxu0 0
        %466 = vmatprep.subr.bf16.mxu0 0
        %467 = vmatpush2.bf16.msra.mxu0 0
        %468 = vmatprep.subr.bf16.mxu0 0
        %469 = vmatpush2.bf16.msra.mxu0 0
        %470 = vmatprep.subr.bf16.mxu0 0
        %471 = vmatpush2.bf16.msra.mxu0 0
        %472 = vmatprep.mubr.bf16.mxu0 0
        %473 = vmatmul.mubr.bf16.gmra.mxu0 %v438
        %v474 = vpop.f32.mrf.mxu0
        %v475 = vadd.f32 0.0, %v474
        %v476 = vpop.f32.mrf.mxu0
        %v477 = vpop.f32.mrf.mxu0
        %v478 = vadd.f32 0.0, %v477
        %v479 = vpop.f32.mrf.mxu0
        %480 = vdwg.mxu0
        %v483 = vunpack.c.l.b16 %v428
        %v484 = vunpack.c.l.b16 %v429
        %v485 = vpack.c.b16 %v484, %v483
        %v487 = vsel %vm320, %v485, 0
        %489 = vmatprep.subr.bf16.mxu0 0
        %490 = vmatpush1.bf16.msra.mxu0 0
        %491 = vmatprep.subr.bf16.mxu0 0
        %492 = vmatpush1.bf16.msra.mxu0 0
        %493 = vmatprep.subr.bf16.mxu0 0
        %494 = vmatpush1.bf16.msra.mxu0 0
        %495 = vmatprep.subr.bf16.mxu0 0
        %496 = vmatpush1.bf16.msra.mxu0 0
        %497 = vmatprep.subr.bf16.mxu0 0
        %498 = vmatpush1.bf16.msra.mxu0 0
        %499 = vmatprep.subr.bf16.mxu0 0
        %500 = vmatpush1.bf16.msra.mxu0 0
        %501 = vmatprep.subr.bf16.mxu0 0
        %502 = vmatpush1.bf16.msra.mxu0 %v423
        %503 = vmatprep.subr.bf16.mxu0 0
        %504 = vmatpush1.bf16.msra.mxu0 %v422
        %505 = vmatprep.subr.bf16.mxu0 0
        %506 = vmatpush2.bf16.msra.mxu0 0
        %507 = vmatprep.subr.bf16.mxu0 0
        %508 = vmatpush2.bf16.msra.mxu0 0
        %509 = vmatprep.subr.bf16.mxu0 0
        %510 = vmatpush2.bf16.msra.mxu0 0
        %511 = vmatprep.subr.bf16.mxu0 0
        %512 = vmatpush2.bf16.msra.mxu0 0
        %513 = vmatprep.subr.bf16.mxu0 0
        %514 = vmatpush2.bf16.msra.mxu0 0
        %515 = vmatprep.subr.bf16.mxu0 0
        %516 = vmatpush2.bf16.msra.mxu0 0
        %517 = vmatprep.subr.bf16.mxu0 0
        %518 = vmatpush2.bf16.msra.mxu0 0
        %519 = vmatprep.subr.bf16.mxu0 0
        %520 = vmatpush2.bf16.msra.mxu0 0
        %521 = vmatprep.mubr.bf16.mxu0 0
        %522 = vmatmul.mubr.bf16.gmra.mxu0 %v487
        %v523 = vpop.f32.mrf.mxu0
        %v524 = vadd.f32 0.0, %v523
        %v525 = vpop.f32.mrf.mxu0
        %v526 = vpop.f32.mrf.mxu0
        %v527 = vadd.f32 0.0, %v526
        %v528 = vpop.f32.mrf.mxu0
        %529 = vdwg.mxu0
        %v532 = vunpack.c.l.b16 %v430
        %v533 = vunpack.c.l.b16 %v431
        %v534 = vpack.c.b16 %v533, %v532
        %v536 = vsel %vm320, %v534, 0
        %538 = vmatprep.subr.bf16.mxu0 0
        %539 = vmatpush1.bf16.msra.mxu0 0
        %540 = vmatprep.subr.bf16.mxu0 0
        %541 = vmatpush1.bf16.msra.mxu0 0
        %542 = vmatprep.subr.bf16.mxu0 0
        %543 = vmatpush1.bf16.msra.mxu0 0
        %544 = vmatprep.subr.bf16.mxu0 0
        %545 = vmatpush1.bf16.msra.mxu0 0
        %546 = vmatprep.subr.bf16.mxu0 0
        %547 = vmatpush1.bf16.msra.mxu0 0
        %548 = vmatprep.subr.bf16.mxu0 0
        %549 = vmatpush1.bf16.msra.mxu0 0
        %550 = vmatprep.subr.bf16.mxu0 0
        %551 = vmatpush1.bf16.msra.mxu0 %v425
        %552 = vmatprep.subr.bf16.mxu0 0
        %553 = vmatpush1.bf16.msra.mxu0 %v424
        %554 = vmatprep.subr.bf16.mxu0 0
        %555 = vmatpush2.bf16.msra.mxu0 0
        %556 = vmatprep.subr.bf16.mxu0 0
        %557 = vmatpush2.bf16.msra.mxu0 0
        %558 = vmatprep.subr.bf16.mxu0 0
        %559 = vmatpush2.bf16.msra.mxu0 0
        %560 = vmatprep.subr.bf16.mxu0 0
        %561 = vmatpush2.bf16.msra.mxu0 0
        %562 = vmatprep.subr.bf16.mxu0 0
        %563 = vmatpush2.bf16.msra.mxu0 0
        %564 = vmatprep.subr.bf16.mxu0 0
        %565 = vmatpush2.bf16.msra.mxu0 0
        %566 = vmatprep.subr.bf16.mxu0 0
        %567 = vmatpush2.bf16.msra.mxu0 0
        %568 = vmatprep.subr.bf16.mxu0 0
        %569 = vmatpush2.bf16.msra.mxu0 0
        %570 = vmatprep.mubr.bf16.mxu0 0
        %571 = vmatmul.mubr.bf16.gmra.mxu0 %v536
        %v572 = vpop.f32.mrf.mxu0
        %v573 = vadd.f32 0.0, %v572
        %v574 = vpop.f32.mrf.mxu0
        %v575 = vpop.f32.mrf.mxu0
        %v576 = vadd.f32 0.0, %v575
        %v577 = vpop.f32.mrf.mxu0
        %578 = vdwg.mxu0
        %v579 = vld [vmem:[%s228] sm:$0x1]
        %v580 = vld [vmem:[%s228 + $0x1] sm:$0x1]
        %v581 = vld [vmem:[%s228 + $0x2] sm:$0x1]
        %v582 = vld [vmem:[%s228 + $0x3] sm:$0x1]
        %v583 = vld [vmem:[%s228 + $0x4] sm:$0x1]
        %v584 = vld [vmem:[%s228 + $0x5] sm:$0x1]
        %v588 = vlaneseq
        %v589 = vshrl.u32 %v588, 7
        %v590 = vsub.s32 0, %v589
        %v591 = vrot.slane %v579, %v590
        %v592 = vlaneseq
        %v593 = vshrl.u32 %v592, 7
        %v594 = vsub.s32 0, %v593
        %v595 = vrot.slane %v581, %v594
        %v596 = vlaneseq
        %v597 = vshrl.u32 %v596, 7
        %v598 = vsub.s32 0, %v597
        %v599 = vrot.slane %v583, %v598
        %v603 = vmul.f32 %v475, %v591
        %v604 = vmul.f32 %v478, %v591
        %v605 = vmul.f32 %v524, %v595
        %v606 = vmul.f32 %v527, %v595
        %v607 = vmul.f32 %v573, %v599
        %v608 = vmul.f32 %v576, %v599
        %v612 = vlaneseq
        %v613 = vshrl.u32 %v612, 7
        %v614 = vsub.s32 0, %v613
        %v615 = vrot.slane %v580, %v614
        %v616 = vlaneseq
        %v617 = vshrl.u32 %v616, 7
        %v618 = vsub.s32 0, %v617
        %v619 = vrot.slane %v582, %v618
        %v620 = vlaneseq
        %v621 = vshrl.u32 %v620, 7
        %v622 = vsub.s32 0, %v621
        %v623 = vrot.slane %v584, %v622
        %v627 = vadd.f32 %v603, %v615
        %v628 = vadd.f32 %v604, %v615
        %v629 = vadd.f32 %v605, %v619
        %v630 = vadd.f32 %v606, %v619
        %v631 = vadd.f32 %v607, %v623
        %v632 = vadd.f32 %v608, %v623
        %vm633 = vcmask 130048
        %634 = vst.msk [vmem:[%s257] sm:$0xff] %vm633, %v627
        %635 = vst.msk [vmem:[%s257 + $0x8] sm:$0xff] %vm633, %v628
        %636 = vst.msk [vmem:[%s257 + $0x10] sm:$0xff] %vm633, %v629
        %637 = vst.msk [vmem:[%s257 + $0x18] sm:$0xff] %vm633, %v630
        %638 = vst.msk [vmem:[%s257 + $0x20] sm:$0xff] %vm633, %v631
        %639 = vst.msk [vmem:[%s257 + $0x28] sm:$0xff] %vm633, %v632
        %s640 = sand.u32 %s126, 1
        %s641 = scalar_lea.sflag [#allocation4], %s640
        %s642 = sand.u32 %s126, 1
        %s643 = smul.addr %s642, 48
        %s644 = scalar_lea.vmem [#allocation7], %s643
        // Predicated region
        $region45: #{tpu_custom_call.1} parent=35 // pred_check
          %p645 = pneg %p136
        $region46: #{tpu_custom_call.1} parent=35 // pred_check_branch
          %647 = sbr.rel (%p645) target = $region48
        $region47: #{tpu_custom_call.1} parent=35 // pred_region
          %s648 = smul.u32 3, %s24
          %s650 = ssub.s32 768, 768
          %651 = vsyncadd %s641, %s650
          %s652 = smul.addr %s648, 2
          %s653 = smul.addr %s652, 128
          %s654 = scalar_lea.hbm %s4, %s653
          %s655 = sshll.u32 %s644, 4
          %s656 = int_to_ptr.vmem [resolvable:$true] %s655
          %661 = dma.vmem_to_hbm [thread:$0]  %s656, 768, %s654, %s641, 128, 128, 8
        $region48: #{tpu_custom_call.1} parent=35 // pred_fallthru
          _
      $region36: #{tpu_custom_call.1} parent=5 // pred_fallthru
        _
      %p662 = scmp.le.s32.totalorder 2, %s19
      // Predicated region
      $region49: #{tpu_custom_call.1} parent=5 // pred_check
        %p663 = pneg %p662
      $region50: #{tpu_custom_call.1} parent=5 // pred_check_branch
        %665 = sbr.rel (%p663) target = $region52
      $region51: #{tpu_custom_call.1} parent=5 // pred_region
        %s666 = ssub.s32 %s19, 2
        // Predicated region
        $region53: #{tpu_custom_call.1} parent=51 // pred_check
          %p667 = pneg %p142
        $region54: #{tpu_custom_call.1} parent=51 // pred_check_branch
          %669 = sbr.rel (%p667) target = $region56
        $region55: #{tpu_custom_call.1} parent=51 // pred_region
          %s670 = sand.u32 %s127, 1
          %s671 = scalar_lea.sflag [#allocation4], %s670
          %s672 = sand.u32 %s127, 1
          %s673 = smul.addr %s672, 48
          %s674 = scalar_lea.vmem [#allocation7], %s673
          %675 = dma.done %s671, 768
        $region56: #{tpu_custom_call.1} parent=51 // pred_fallthru
          _
      $region52: #{tpu_custom_call.1} parent=5 // pred_fallthru
        _
    $region6: #{tpu_custom_call.1} parent=1 // loop_footer
      %s23 = sadd.s32 1, %s19
    $region7: #{tpu_custom_call.1} parent=1 // loop_footer_branch
      %18 = sbr.rel target = $region3
    $region8: #{tpu_custom_call.1} parent=1 // loop_exit
      _
    %676 = vsyncpa [#allocation3], 1
    %s677 = scalar_lea.sflag [#allocation3], 1
    %678 = vsyncpa %s677, 1
    %679 = vsyncpa [#allocation6], 1
    %s680 = scalar_lea.sflag [#allocation6], 1
    %681 = vsyncpa %s680, 1
    %682 = vsyncpa [#allocation4], 1
    %s683 = scalar_lea.sflag [#allocation4], 1
    %684 = vsyncpa %s683, 1

</llo_original>
